<compile_context>
chip_gen: v7x
topology: tpu7x:2x2x1
jax: 0.10.0
libtpu: 0.0.40
codegen_flags: <defaults>
</compile_context>

<pallas_src>
import functools

import jax
import jax.numpy as jnp
from jax import lax
from jax.experimental import pallas as pl
from jax.experimental.pallas import tpu as pltpu


def _appnp_kernel(adj_t_ref, norm_col_ref, norm_row_ref, h0_ref, out_ref,
                  adj_scratch, *, alpha, k, matmul_dtype):
    # One-time fold (per graph) of normalization + damping into the *transposed*
    # adjacency, done in f32 (v5e has no bf16 VPU), then stashed in VMEM scratch
    # in the matmul dtype so the unrolled loop doesn't keep it live in vregs:
    #   adj_hat_T[s, d] = (1 - alpha) * norm[s] * adj[d, s] * norm[d]
    adj_hat_t = (1.0 - alpha) * (norm_col_ref[0] * adj_t_ref[0] * norm_row_ref[0])
    adj_scratch[...] = adj_hat_t.astype(matmul_dtype)

    # Features on sublanes: h_T is [F_pad, N]; N (=128 here) is lane-dense.
    h0 = h0_ref[0].astype(jnp.float32)
    alpha_h0 = alpha * h0          # hoisted loop invariant

    # k is a small static count -> fully unroll; carry h in registers (f32),
    # cast the matmul operand only (f32 accumulation on the MXU).
    def body(_, h):
        p = jnp.dot(h.astype(matmul_dtype), adj_scratch[...],
                    preferred_element_type=jnp.float32)
        return p + alpha_h0

    h = lax.fori_loop(0, k, body, h0, unroll=True)
    out_ref[0] = h.astype(out_ref.dtype)


def graph_propagation(adj, norm, h, *, alpha, k, matmul_dtype=jnp.bfloat16):
    """APPNP propagation (edge_drop=0 branch).

    adj:  [N, N] or [B, N, N]   dense message matrix, adj[dst, src]
    norm: [N, 1] or [B, N, 1]   per-node symmetric-normalization factor
    h:    [N, F] or [B, N, F]   node features
    """
    squeeze = adj.ndim == 2
    if squeeze:
        adj, norm, h = adj[None], norm[None], h[None]

    B, N, F = h.shape
    assert adj.shape == (B, N, N)
    assert norm.shape == (B, N, 1)

    # Feature axis lives on the sublane axis in-kernel -> pad only to the f32
    # sublane granule (8).  Zero-padded feature rows stay exactly zero.
    F_pad = max(8, ((F + 7) // 8) * 8)
    h_t = jnp.swapaxes(h, -1, -2)                       # [B, F, N]
    if F_pad != F:
        h_t = jnp.pad(h_t, ((0, 0), (0, F_pad - F), (0, 0)))

    adj_t = jnp.swapaxes(adj, -1, -2)                   # [B, N, N], transposed adjacency
    norm_col = norm                                     # [B, N, 1] (scales src rows of adj_T)
    norm_row = jnp.swapaxes(norm, -1, -2)               # [B, 1, N] (scales dst cols of adj_T)

    kernel = functools.partial(_appnp_kernel, alpha=float(alpha), k=int(k),
                               matmul_dtype=matmul_dtype)

    out_t = pl.pallas_call(
        kernel,
        out_shape=jax.ShapeDtypeStruct((B, F_pad, N), h.dtype),
        grid=(B,),
        in_specs=[
            pl.BlockSpec((1, N, N), lambda b: (b, 0, 0)),      # transposed adjacency
            pl.BlockSpec((1, N, 1), lambda b: (b, 0, 0)),      # norm, column layout
            pl.BlockSpec((1, 1, N), lambda b: (b, 0, 0)),      # norm, row layout
            pl.BlockSpec((1, F_pad, N), lambda b: (b, 0, 0)),  # initial features (transposed)
        ],
        out_specs=pl.BlockSpec((1, F_pad, N), lambda b: (b, 0, 0)),
        scratch_shapes=[pltpu.VMEM((N, N), matmul_dtype)],     # folded adjacency, per grid step
        compiler_params=pltpu.CompilerParams(
            # Batch (graph) axis is independent -> megacore-shardable on v7x and
            # pipelined DMA across graphs on all generations.
            dimension_semantics=("parallel",),
        ),
    )(adj_t, norm_col, norm_row, h_t)

    out = jnp.swapaxes(out_t[:, :F, :], -1, -2)         # [B, N, F]
    return out[0] if squeeze else out


def _reference(adj, norm, h, *, alpha, k):
    cached = h
    for _ in range(k):
        h = h * norm
        h = jnp.matmul(adj, h)
        h = h * norm
        h = h * (1.0 - alpha) + cached * alpha
    return h


if __name__ == "__main__":
    key = jax.random.PRNGKey(0)
    k_edges, k_feat = jax.random.split(key)

    B = 2            # independent graphs batched into one pallas_call
    N = 128          # nodes per graph
    F = 32           # feature dim (output of the preceding MLP in APPNP)
    alpha = 0.1      # teleport probability
    k = 10           # propagation steps
    # edge_drop = 0.0  -> deterministic copy_src branch

    # Deterministic synthetic graphs: dense 0/1 message matrices with ~10% edges,
    # plus self-loops (standard for APPNP/GCN-style propagation).
    adj = (jax.random.uniform(k_edges, (B, N, N)) < 0.1).astype(jnp.float32)
    adj = jnp.maximum(adj, jnp.eye(N, dtype=jnp.float32)[None])

    # Symmetric GCN norm: deg^{-1/2} over in-degree (rows of adj).
    deg = jnp.sum(adj, axis=-1, keepdims=True)           # [B, N, 1]
    norm = 1.0 / jnp.sqrt(jnp.maximum(deg, 1.0))          # [B, N, 1]

    h = jax.random.normal(k_feat, (B, N, F), dtype=jnp.float32)

    ref = _reference(adj, norm, h, alpha=alpha, k=k)

    # Exact-arithmetic (f32 matmul) path: tight check of the propagation algebra.
    out_f32 = graph_propagation(adj, norm, h, alpha=alpha, k=k,
                                matmul_dtype=jnp.float32)
    out_f32 = jax.block_until_ready(out_f32)
    assert out_f32.shape == (B, N, F)
    assert jnp.allclose(out_f32, ref, atol=1e-4, rtol=1e-4), "f32 path mismatch"

    # Fast path (default): bf16 MXU operands, f32 accumulation.  bf16 rounding
    # compounds over the k=10 recursion, so the tolerance is looser here.
    out_bf16 = graph_propagation(adj, norm, h, alpha=alpha, k=k,
                                 matmul_dtype=jnp.bfloat16)
    out_bf16 = jax.block_until_ready(out_bf16)
    assert out_bf16.shape == (B, N, F)
    assert jnp.allclose(out_bf16, ref, atol=5e-2, rtol=5e-2), "bf16 path mismatch"

    print("KERNEL_OK")
</pallas_src>

<mosaic_0001>
module attributes {stable_mosaic.version = 11 : i64} {
  func.func @_appnp_kernel(%arg0: i32, %arg1: memref<1x128x128xf32, #tpu.memory_space<vmem>>, %arg2: memref<1x128x1xf32, #tpu.memory_space<vmem>>, %arg3: memref<1x1x128xf32, #tpu.memory_space<vmem>>, %arg4: memref<1x32x128xf32, #tpu.memory_space<vmem>>, %arg5: memref<1x32x128xf32, #tpu.memory_space<vmem>>, %arg6: memref<128x128xf32, #tpu.memory_space<vmem>>) attributes {dimension_semantics = [#tpu.dimension_semantics<parallel>], iteration_bounds = array<i64: 2>, scalar_prefetch = 0 : i64, scratch_operands = 1 : i64, tpu.core_type = #tpu.core_type<tc>, window_params = [{transform_indices = @transform_0, window_bounds = array<i64: 1, 128, 128>}, {transform_indices = @transform_1, window_bounds = array<i64: 1, 128, 1>}, {transform_indices = @transform_2, window_bounds = array<i64: 1, 1, 128>}, {transform_indices = @transform_3, window_bounds = array<i64: 1, 32, 128>}, {transform_indices = @transform_4, window_bounds = array<i64: 1, 32, 128>}]} {
    %c0 = arith.constant 0 : index
    %c0_0 = arith.constant 0 : index
    %c0_1 = arith.constant 0 : index
    %0 = vector.load %arg2[%c0, %c0_0, %c0_1] : memref<1x128x1xf32, #tpu.memory_space<vmem>>, vector<1x128x1xf32>
    %1 = vector.shape_cast %0 : vector<1x128x1xf32> to vector<128x1xf32>
    %c0_2 = arith.constant 0 : index
    %c0_3 = arith.constant 0 : index
    %c0_4 = arith.constant 0 : index
    %2 = vector.load %arg1[%c0_2, %c0_3, %c0_4] : memref<1x128x128xf32, #tpu.memory_space<vmem>>, vector<1x128x128xf32>
    %3 = vector.shape_cast %2 : vector<1x128x128xf32> to vector<128x128xf32>
    %4 = vector.broadcast %1 : vector<128x1xf32> to vector<128x128xf32>
    %5 = arith.mulf %4, %3 : vector<128x128xf32>
    %c0_5 = arith.constant 0 : index
    %c0_6 = arith.constant 0 : index
    %c0_7 = arith.constant 0 : index
    %6 = vector.load %arg3[%c0_5, %c0_6, %c0_7] : memref<1x1x128xf32, #tpu.memory_space<vmem>>, vector<1x1x128xf32>
    %7 = vector.shape_cast %6 : vector<1x1x128xf32> to vector<1x128xf32>
    %8 = vector.broadcast %7 : vector<1x128xf32> to vector<128x128xf32>
    %9 = arith.mulf %5, %8 : vector<128x128xf32>
    %cst = arith.constant 0.899999976 : f32
    %10 = vector.broadcast %cst : f32 to vector<128x128xf32>
    %11 = arith.mulf %10, %9 : vector<128x128xf32>
    %c0_8 = arith.constant 0 : index
    %c0_9 = arith.constant 0 : index
    %12 = vector.load %arg6[%c0_8, %c0_9] : memref<128x128xf32, #tpu.memory_space<vmem>>, vector<128x128xf32>
    tpu.vector_store %arg6[%c0_8, %c0_9], %11 {strides = array<i32>} : memref<128x128xf32, #tpu.memory_space<vmem>>, vector<128x128xf32>,
    %c0_10 = arith.constant 0 : index
    %c0_11 = arith.constant 0 : index
    %c0_12 = arith.constant 0 : index
    %13 = vector.load %arg4[%c0_10, %c0_11, %c0_12] : memref<1x32x128xf32, #tpu.memory_space<vmem>>, vector<1x32x128xf32>
    %14 = vector.shape_cast %13 : vector<1x32x128xf32> to vector<32x128xf32>
    %cst_13 = arith.constant 1.000000e-01 : f32
    %15 = vector.broadcast %cst_13 : f32 to vector<32x128xf32>
    %16 = arith.mulf %15, %14 : vector<32x128xf32>
    %c0_i32 = arith.constant 0 : i32
    %c0_14 = arith.constant 0 : index
    %c0_15 = arith.constant 0 : index
    %17 = vector.load %arg6[%c0_14, %c0_15] : memref<128x128xf32, #tpu.memory_space<vmem>>, vector<128x128xf32>
    %cst_16 = arith.constant dense<0.000000e+00> : vector<32x128xf32>
    %18 = tpu.matmul %14, %17, %cst_16 {dimension_numbers = #tpu.dot_dimension_numbers<[1], [0], [0], [1], [0, 0, 1, 1], [], []>} : vector<32x128xf32>, vector<128x128xf32>, vector<32x128xf32> -> vector<32x128xf32>
    %19 = arith.addf %18, %16 : vector<32x128xf32>
    %c1_i32 = arith.constant 1 : i32
    %c0_17 = arith.constant 0 : index
    %c0_18 = arith.constant 0 : index
    %20 = vector.load %arg6[%c0_17, %c0_18] : memref<128x128xf32, #tpu.memory_space<vmem>>, vector<128x128xf32>
    %cst_19 = arith.constant dense<0.000000e+00> : vector<32x128xf32>
    %21 = tpu.matmul %19, %20, %cst_19 {dimension_numbers = #tpu.dot_dimension_numbers<[1], [0], [0], [1], [0, 0, 1, 1], [], []>} : vector<32x128xf32>, vector<128x128xf32>, vector<32x128xf32> -> vector<32x128xf32>
    %22 = arith.addf %21, %16 : vector<32x128xf32>
    %c2_i32 = arith.constant 2 : i32
    %c0_20 = arith.constant 0 : index
    %c0_21 = arith.constant 0 : index
    %23 = vector.load %arg6[%c0_20, %c0_21] : memref<128x128xf32, #tpu.memory_space<vmem>>, vector<128x128xf32>
    %cst_22 = arith.constant dense<0.000000e+00> : vector<32x128xf32>
    %24 = tpu.matmul %22, %23, %cst_22 {dimension_numbers = #tpu.dot_dimension_numbers<[1], [0], [0], [1], [0, 0, 1, 1], [], []>} : vector<32x128xf32>, vector<128x128xf32>, vector<32x128xf32> -> vector<32x128xf32>
    %25 = arith.addf %24, %16 : vector<32x128xf32>
    %c3_i32 = arith.constant 3 : i32
    %c0_23 = arith.constant 0 : index
    %c0_24 = arith.constant 0 : index
    %26 = vector.load %arg6[%c0_23, %c0_24] : memref<128x128xf32, #tpu.memory_space<vmem>>, vector<128x128xf32>
    %cst_25 = arith.constant dense<0.000000e+00> : vector<32x128xf32>
    %27 = tpu.matmul %25, %26, %cst_25 {dimension_numbers = #tpu.dot_dimension_numbers<[1], [0], [0], [1], [0, 0, 1, 1], [], []>} : vector<32x128xf32>, vector<128x128xf32>, vector<32x128xf32> -> vector<32x128xf32>
    %28 = arith.addf %27, %16 : vector<32x128xf32>
    %c4_i32 = arith.constant 4 : i32
    %c0_26 = arith.constant 0 : index
    %c0_27 = arith.constant 0 : index
    %29 = vector.load %arg6[%c0_26, %c0_27] : memref<128x128xf32, #tpu.memory_space<vmem>>, vector<128x128xf32>
    %cst_28 = arith.constant dense<0.000000e+00> : vector<32x128xf32>
    %30 = tpu.matmul %28, %29, %cst_28 {dimension_numbers = #tpu.dot_dimension_numbers<[1], [0], [0], [1], [0, 0, 1, 1], [], []>} : vector<32x128xf32>, vector<128x128xf32>, vector<32x128xf32> -> vector<32x128xf32>
    %31 = arith.addf %30, %16 : vector<32x128xf32>
    %c5_i32 = arith.constant 5 : i32
    %c0_29 = arith.constant 0 : index
    %c0_30 = arith.constant 0 : index
    %32 = vector.load %arg6[%c0_29, %c0_30] : memref<128x128xf32, #tpu.memory_space<vmem>>, vector<128x128xf32>
    %cst_31 = arith.constant dense<0.000000e+00> : vector<32x128xf32>
    %33 = tpu.matmul %31, %32, %cst_31 {dimension_numbers = #tpu.dot_dimension_numbers<[1], [0], [0], [1], [0, 0, 1, 1], [], []>} : vector<32x128xf32>, vector<128x128xf32>, vector<32x128xf32> -> vector<32x128xf32>
    %34 = arith.addf %33, %16 : vector<32x128xf32>
    %c6_i32 = arith.constant 6 : i32
    %c0_32 = arith.constant 0 : index
    %c0_33 = arith.constant 0 : index
    %35 = vector.load %arg6[%c0_32, %c0_33] : memref<128x128xf32, #tpu.memory_space<vmem>>, vector<128x128xf32>
    %cst_34 = arith.constant dense<0.000000e+00> : vector<32x128xf32>
    %36 = tpu.matmul %34, %35, %cst_34 {dimension_numbers = #tpu.dot_dimension_numbers<[1], [0], [0], [1], [0, 0, 1, 1], [], []>} : vector<32x128xf32>, vector<128x128xf32>, vector<32x128xf32> -> vector<32x128xf32>
    %37 = arith.addf %36, %16 : vector<32x128xf32>
    %c7_i32 = arith.constant 7 : i32
    %c0_35 = arith.constant 0 : index
    %c0_36 = arith.constant 0 : index
    %38 = vector.load %arg6[%c0_35, %c0_36] : memref<128x128xf32, #tpu.memory_space<vmem>>, vector<128x128xf32>
    %cst_37 = arith.constant dense<0.000000e+00> : vector<32x128xf32>
    %39 = tpu.matmul %37, %38, %cst_37 {dimension_numbers = #tpu.dot_dimension_numbers<[1], [0], [0], [1], [0, 0, 1, 1], [], []>} : vector<32x128xf32>, vector<128x128xf32>, vector<32x128xf32> -> vector<32x128xf32>
    %40 = arith.addf %39, %16 : vector<32x128xf32>
    %c8_i32 = arith.constant 8 : i32
    %c0_38 = arith.constant 0 : index
    %c0_39 = arith.constant 0 : index
    %41 = vector.load %arg6[%c0_38, %c0_39] : memref<128x128xf32, #tpu.memory_space<vmem>>, vector<128x128xf32>
    %cst_40 = arith.constant dense<0.000000e+00> : vector<32x128xf32>
    %42 = tpu.matmul %40, %41, %cst_40 {dimension_numbers = #tpu.dot_dimension_numbers<[1], [0], [0], [1], [0, 0, 1, 1], [], []>} : vector<32x128xf32>, vector<128x128xf32>, vector<32x128xf32> -> vector<32x128xf32>
    %43 = arith.addf %42, %16 : vector<32x128xf32>
    %c9_i32 = arith.constant 9 : i32
    %c0_41 = arith.constant 0 : index
    %c0_42 = arith.constant 0 : index
    %44 = vector.load %arg6[%c0_41, %c0_42] : memref<128x128xf32, #tpu.memory_space<vmem>>, vector<128x128xf32>
    %cst_43 = arith.constant dense<0.000000e+00> : vector<32x128xf32>
    %45 = tpu.matmul %43, %44, %cst_43 {dimension_numbers = #tpu.dot_dimension_numbers<[1], [0], [0], [1], [0, 0, 1, 1], [], []>} : vector<32x128xf32>, vector<128x128xf32>, vector<32x128xf32> -> vector<32x128xf32>
    %46 = arith.addf %45, %16 : vector<32x128xf32>
    %c0_44 = arith.constant 0 : index
    %c0_45 = arith.constant 0 : index
    %c0_46 = arith.constant 0 : index
    %47 = vector.load %arg5[%c0_44, %c0_45, %c0_46] : memref<1x32x128xf32, #tpu.memory_space<vmem>>, vector<1x32x128xf32>
    %48 = vector.shape_cast %47 : vector<1x32x128xf32> to vector<32x128xf32>
    %49 = vector.shape_cast %46 : vector<32x128xf32> to vector<1x32x128xf32>
    tpu.vector_store %arg5[%c0_44, %c0_45, %c0_46], %49 {strides = array<i32>} : memref<1x32x128xf32, #tpu.memory_space<vmem>>, vector<1x32x128xf32>,
    return
  }
  func.func @transform_0(%arg0: i32) -> (i32, i32, i32) {
    %c0_i32 = arith.constant 0 : i32
    %c0_i32_0 = arith.constant 0 : i32
    %c0_i32_1 = arith.constant 0 : i32
    return %arg0, %c0_i32, %c0_i32_0 : i32, i32, i32
  }
  func.func @transform_1(%arg0: i32) -> (i32, i32, i32) {
    %c0_i32 = arith.constant 0 : i32
    %c0_i32_0 = arith.constant 0 : i32
    %c0_i32_1 = arith.constant 0 : i32
    return %arg0, %c0_i32, %c0_i32_0 : i32, i32, i32
  }
  func.func @transform_2(%arg0: i32) -> (i32, i32, i32) {
    %c0_i32 = arith.constant 0 : i32
    %c0_i32_0 = arith.constant 0 : i32
    %c0_i32_1 = arith.constant 0 : i32
    return %arg0, %c0_i32, %c0_i32_0 : i32, i32, i32
  }
  func.func @transform_3(%arg0: i32) -> (i32, i32, i32) {
    %c0_i32 = arith.constant 0 : i32
    %c0_i32_0 = arith.constant 0 : i32
    %c0_i32_1 = arith.constant 0 : i32
    return %arg0, %c0_i32, %c0_i32_0 : i32, i32, i32
  }
  func.func @transform_4(%arg0: i32) -> (i32, i32, i32) {
    %c0_i32 = arith.constant 0 : i32
    %c0_i32_0 = arith.constant 0 : i32
    %c0_i32_1 = arith.constant 0 : i32
    return %arg0, %c0_i32, %c0_i32_0 : i32, i32, i32
  }
}

</mosaic_0001>

<llo_original>
// kernel: tpu_custom_call.1
$region0: #{tpu_custom_call.1}
  #allocation0 [shape = 'u32[]', space=smem, size = 0x4, offset = 0x4, fixed_abs, tag = 'smem constant byte address 0x4 - core index']
  #allocation1 [shape = 'u32[144,128]{1,0:T(1,128)}', space=vmem, size = 0x12000, scoped, tag = 'internal scratch']
  #allocation2 [shape = 'f32[128,128]{1,0:T(8,128)}', space=vmem, size = 0x10000, scoped, tag = 'scratch operand']
  %s0 = inlined_call_operand.vmem [shape: f32[2,128,128], index: 0, kind: input, shape index: {}]
  %s1 = inlined_call_operand.vmem [shape: f32[2,128,1], index: 1, kind: input, shape index: {}]
  %s2 = inlined_call_operand.vmem [shape: f32[2,1,128], index: 2, kind: input, shape index: {}]
  %s3 = inlined_call_operand.hbm [shape: f32[2,32,128], index: 3, kind: input, shape index: {}]
  %s4 = inlined_call_operand.hbm [shape: f32[2,32,128], index: 4, kind: output, shape index: {}]
  %s5 = sld [smem:[#allocation0]]
  $region53: #{tpu_custom_call.1} parent=0
    _
  %s7 = ssub.s32 1, %s5
  %s8 = scalar_select 0, %s7, %s5
  $region1: #{tpu_custom_call.1} parent=0
    #allocation3 [shape = 'u8[32768]{0}', space=vmem, size = 0x8000, scoped, tag = 'input window, operand 3']
    #allocation4 [shape = 's32[2]{0}', space=sflag, size = 0x8, scoped, tag = 'scoped memory for tpu_custom_call.1']
    #allocation5 [shape = 's32[2]{0}', space=sflag, size = 0x8, scoped, tag = 'scoped memory for tpu_custom_call.1']
    #allocation6 [shape = 'u8[32768]{0}', space=vmem, size = 0x8000, scoped, tag = 'output window, operand 0']
    %9 = vsyncpa [#allocation4], 0
    %s10 = scalar_lea.sflag [#allocation4], 1
    %11 = vsyncpa %s10, 0
    %12 = vsyncpa [#allocation5], 0
    %s13 = scalar_lea.sflag [#allocation5], 1
    %14 = vsyncpa %s13, 0
    loop: start=0, step=1, limit=4
    $region2: #{tpu_custom_call.1} parent=1 // loop_pre_header
      _
    $region3: #{tpu_custom_call.1} parent=1 // loop_header
      %s16 = sphi 0, %s20
      %p17 = scmp.ge.s32.totalorder %s16, 4
      %s26 = sphi 0, %s28
      %s29 = sphi 0, %s26
      %s30 = sphi 0, %s29
      %s46 = sphi 0, %s30
      %s52 = sphi 0, %s54
      %s55 = sphi 0, %s52
      %s56 = sphi 0, %s55
      %s72 = sphi 0, %s56
      %s78 = sphi 0, %s80
      %s81 = sphi 0, %s78
      %s82 = sphi 0, %s81
      %s98 = sphi 0, %s82
      %s104 = sphi 0, %s106
      %s107 = sphi 0, %s104
      %s108 = sphi 0, %s107
      %s124 = sphi 0, %s108
      %s130 = sphi 0, %s132
      %s133 = sphi 0, %s130
      %s134 = sphi 0, %s133
      %s150 = sphi 0, %s134
    $region4: #{tpu_custom_call.1} parent=1 // loop_header_branch
      %19 = sbr.rel (%p17) target = $region8
    $region5: #{tpu_custom_call.1} parent=1 // loop_body
      %s21 = ssub.s32 %s16, 1
      %s22 = ssub.s32 %s16, 2
      %s23 = sadd.s32 %s16, 1
      %s24 = ssub.s32 %s16, %s23
      %p25 = scmp.eq.s32.totalorder %s24, 0
      %s27 = sadd.s32 %s26, 1
      %s28 = scalar_select %p25, %s26, %s27
      %p31 = pneg %p25
      %p32 = scmp.eq.s32.totalorder %s16, 1
      %p33 = por %p31, %p32
      %p34 = scmp.ne.s32.totalorder %s26, %s29
      %p35 = scmp.eq.s32.totalorder %s16, 0
      %p36 = por %p34, %p35
      %p37 = scmp.ne.s32.totalorder %s26, %s29
      %p38 = scmp.eq.s32.totalorder %s21, 1
      %p39 = por %p37, %p38
      %p40 = scmp.ne.s32.totalorder %s29, %s30
      %p41 = scmp.eq.s32.totalorder %s21, 0
      %p42 = por %p40, %p41
      %p43 = scmp.ne.s32.totalorder %s29, %s30
      %p44 = scmp.eq.s32.totalorder %s22, 1
      %p45 = por %p43, %p44
      %p47 = scmp.ne.s32.totalorder %s30, %s46
      %p48 = scmp.eq.s32.totalorder %s22, 0
      %p49 = por %p47, %p48
      %s50 = ssub.s32 %s16, %s23
      %p51 = scmp.eq.s32.totalorder %s50, 0
      %s53 = sadd.s32 %s52, 1
      %s54 = scalar_select %p51, %s52, %s53
      %p57 = pneg %p51
      %p58 = scmp.eq.s32.totalorder %s16, 1
      %p59 = por %p57, %p58
      %p60 = scmp.ne.s32.totalorder %s52, %s55
      %p61 = scmp.eq.s32.totalorder %s16, 0
      %p62 = por %p60, %p61
      %p63 = scmp.ne.s32.totalorder %s52, %s55
      %p64 = scmp.eq.s32.totalorder %s21, 1
      %p65 = por %p63, %p64
      %p66 = scmp.ne.s32.totalorder %s55, %s56
      %p67 = scmp.eq.s32.totalorder %s21, 0
      %p68 = por %p66, %p67
      %p69 = scmp.ne.s32.totalorder %s55, %s56
      %p70 = scmp.eq.s32.totalorder %s22, 1
      %p71 = por %p69, %p70
      %p73 = scmp.ne.s32.totalorder %s56, %s72
      %p74 = scmp.eq.s32.totalorder %s22, 0
      %p75 = por %p73, %p74
      %s76 = ssub.s32 %s16, %s23
      %p77 = scmp.eq.s32.totalorder %s76, 0
      %s79 = sadd.s32 %s78, 1
      %s80 = scalar_select %p77, %s78, %s79
      %p83 = pneg %p77
      %p84 = scmp.eq.s32.totalorder %s16, 1
      %p85 = por %p83, %p84
      %p86 = scmp.ne.s32.totalorder %s78, %s81
      %p87 = scmp.eq.s32.totalorder %s16, 0
      %p88 = por %p86, %p87
      %p89 = scmp.ne.s32.totalorder %s78, %s81
      %p90 = scmp.eq.s32.totalorder %s21, 1
      %p91 = por %p89, %p90
      %p92 = scmp.ne.s32.totalorder %s81, %s82
      %p93 = scmp.eq.s32.totalorder %s21, 0
      %p94 = por %p92, %p93
      %p95 = scmp.ne.s32.totalorder %s81, %s82
      %p96 = scmp.eq.s32.totalorder %s22, 1
      %p97 = por %p95, %p96
      %p99 = scmp.ne.s32.totalorder %s82, %s98
      %p100 = scmp.eq.s32.totalorder %s22, 0
      %p101 = por %p99, %p100
      %s102 = ssub.s32 %s16, %s23
      %p103 = scmp.eq.s32.totalorder %s102, 0
      %s105 = sadd.s32 %s104, 1
      %s106 = scalar_select %p103, %s104, %s105
      %p109 = pneg %p103
      %p110 = scmp.eq.s32.totalorder %s16, 1
      %p111 = por %p109, %p110
      %p112 = scmp.ne.s32.totalorder %s104, %s107
      %p113 = scmp.eq.s32.totalorder %s16, 0
      %p114 = por %p112, %p113
      %p115 = scmp.ne.s32.totalorder %s104, %s107
      %p116 = scmp.eq.s32.totalorder %s21, 1
      %p117 = por %p115, %p116
      %p118 = scmp.ne.s32.totalorder %s107, %s108
      %p119 = scmp.eq.s32.totalorder %s21, 0
      %p120 = por %p118, %p119
      %p121 = scmp.ne.s32.totalorder %s107, %s108
      %p122 = scmp.eq.s32.totalorder %s22, 1
      %p123 = por %p121, %p122
      %p125 = scmp.ne.s32.totalorder %s108, %s124
      %p126 = scmp.eq.s32.totalorder %s22, 0
      %p127 = por %p125, %p126
      %s128 = ssub.s32 %s16, %s23
      %p129 = scmp.eq.s32.totalorder %s128, 0
      %s131 = sadd.s32 %s130, 1
      %s132 = scalar_select %p129, %s130, %s131
      %p135 = pneg %p129
      %p136 = scmp.eq.s32.totalorder %s16, 1
      %p137 = por %p135, %p136
      %p138 = scmp.ne.s32.totalorder %s130, %s133
      %p139 = scmp.eq.s32.totalorder %s16, 0
      %p140 = por %p138, %p139
      %p141 = scmp.ne.s32.totalorder %s130, %s133
      %p142 = scmp.eq.s32.totalorder %s21, 1
      %p143 = por %p141, %p142
      %p144 = scmp.ne.s32.totalorder %s133, %s134
      %p145 = scmp.eq.s32.totalorder %s21, 0
      %p146 = por %p144, %p145
      %p147 = scmp.ne.s32.totalorder %s133, %s134
      %p148 = scmp.eq.s32.totalorder %s22, 1
      %p149 = por %p147, %p148
      %p151 = scmp.ne.s32.totalorder %s134, %s150
      %p152 = scmp.eq.s32.totalorder %s22, 0
      %p153 = por %p151, %p152
      %p154 = scmp.le.s32.totalorder 1, %s16
      %p155 = scmp.lt.s32.totalorder %s16, 3
      %p156 = pnand %p154, %p155
      %p157 = pneg %p156
      // Predicated region
      $region9: #{tpu_custom_call.1} parent=5 // pred_check
        _
      $region10: #{tpu_custom_call.1} parent=5 // pred_check_branch
        %159 = sbr.rel (%p156) target = $region12
      $region11: #{tpu_custom_call.1} parent=5 // pred_region
        %s160 = ssub.s32 %s16, 1
      $region12: #{tpu_custom_call.1} parent=5 // pred_fallthru
        _
      %p161 = scmp.lt.s32.totalorder %s16, 2
      // Predicated region
      $region13: #{tpu_custom_call.1} parent=5 // pred_check
        %p162 = pneg %p161
      $region14: #{tpu_custom_call.1} parent=5 // pred_check_branch
        %164 = sbr.rel (%p162) target = $region16
      $region15: #{tpu_custom_call.1} parent=5 // pred_region
        // Predicated region
        $region17: #{tpu_custom_call.1} parent=15 // pred_check
          %p165 = pneg %p36
        $region18: #{tpu_custom_call.1} parent=15 // pred_check_branch
          %167 = sbr.rel (%p165) target = $region20
        $region19: #{tpu_custom_call.1} parent=15 // pred_region
          %p168 = scmp.lt.s32.totalorder %s16, 1
          %s169 = scalar_select %p168, %s16, 1
          %s170 = smul.addr %s169, 16
          %s171 = smul.addr %s170, 8
          %s172 = scalar_lea.vmem %s0, %s171
        $region20: #{tpu_custom_call.1} parent=15 // pred_fallthru
          _
        // Predicated region
        $region21: #{tpu_custom_call.1} parent=15 // pred_check
          %p173 = pneg %p62
        $region22: #{tpu_custom_call.1} parent=15 // pred_check_branch
          %175 = sbr.rel (%p173) target = $region24
        $region23: #{tpu_custom_call.1} parent=15 // pred_region
          %p176 = scmp.lt.s32.totalorder %s16, 1
          %s177 = scalar_select %p176, %s16, 1
          %s178 = smul.addr %s177, 16
          %s179 = smul.addr %s178, 8
          %s180 = scalar_lea.vmem %s1, %s179
        $region24: #{tpu_custom_call.1} parent=15 // pred_fallthru
          _
        // Predicated region
        $region25: #{tpu_custom_call.1} parent=15 // pred_check
          %p181 = pneg %p88
        $region26: #{tpu_custom_call.1} parent=15 // pred_check_branch
          %183 = sbr.rel (%p181) target = $region28
        $region27: #{tpu_custom_call.1} parent=15 // pred_region
          %p184 = scmp.lt.s32.totalorder %s16, 1
          %s185 = scalar_select %p184, %s16, 1
          %s186 = scalar_lea.vmem %s2, %s185
        $region28: #{tpu_custom_call.1} parent=15 // pred_fallthru
          _
        // Predicated region
        $region29: #{tpu_custom_call.1} parent=15 // pred_check
          %p187 = pneg %p114
        $region30: #{tpu_custom_call.1} parent=15 // pred_check_branch
          %189 = sbr.rel (%p187) target = $region32
        $region31: #{tpu_custom_call.1} parent=15 // pred_region
          %s190 = sand.u32 %s104, 1
          %s191 = scalar_lea.sflag [#allocation4], %s190
          %s192 = sand.u32 %s104, 1
          %s193 = smul.addr %s192, 32
          %s194 = scalar_lea.vmem [#allocation3], %s193
          %s196 = ssub.s32 512, 512
          %197 = vsyncadd %s191, %s196
          %s198 = smul.addr %s16, 4
          %s199 = smul.addr %s198, 128
          %s200 = scalar_lea.hbm %s3, %s199
          %s201 = sshll.u32 %s194, 4
          %s202 = int_to_ptr.vmem [resolvable:$true] %s201
          %207 = dma.hbm_to_vmem [thread:$0]  %s200, 512, %s202, %s191, 128, 128, 8
        $region32: #{tpu_custom_call.1} parent=15 // pred_fallthru
          _
      $region16: #{tpu_custom_call.1} parent=5 // pred_fallthru
        _
      %p208 = scmp.le.s32.totalorder 1, %s16
      %p209 = scmp.lt.s32.totalorder %s16, 3
      %p210 = pnand %p208, %p209
      %p211 = pneg %p210
      // Predicated region
      $region33: #{tpu_custom_call.1} parent=5 // pred_check
        _
      $region34: #{tpu_custom_call.1} parent=5 // pred_check_branch
        %213 = sbr.rel (%p210) target = $region36
      $region35: #{tpu_custom_call.1} parent=5 // pred_region
        %s214 = ssub.s32 %s16, 1
        %s215 = sand.u32 %s107, 1
        %s216 = scalar_lea.sflag [#allocation4], %s215
        %s217 = sand.u32 %s107, 1
        %s218 = smul.addr %s217, 32
        %s219 = scalar_lea.vmem [#allocation3], %s218
        // Predicated region
        $region37: #{tpu_custom_call.1} parent=35 // pred_check
          %p220 = pneg %p120
        $region38: #{tpu_custom_call.1} parent=35 // pred_check_branch
          %222 = sbr.rel (%p220) target = $region40
        $region39: #{tpu_custom_call.1} parent=35 // pred_region
          %223 = dma.done %s216, 512
        $region40: #{tpu_custom_call.1} parent=35 // pred_fallthru
          _
        %p224 = scmp.lt.s32.totalorder %s21, 1
        %s225 = scalar_select %p224, %s21, 1
        %s226 = smul.addr %s225, 16
        %s227 = smul.addr %s226, 8
        %s228 = scalar_lea.vmem %s0, %s227
        %p229 = pneg %p42
        %p230 = pneg %p39
        %p231 = scmp.lt.s32.totalorder %s21, 1
        %s232 = scalar_select %p231, %s21, 1
        %s233 = smul.addr %s232, 16
        %s234 = smul.addr %s233, 8
        %s235 = scalar_lea.vmem %s1, %s234
        %p236 = pneg %p68
        %p237 = pneg %p65
        %p238 = scmp.lt.s32.totalorder %s21, 1
        %s239 = scalar_select %p238, %s21, 1
        %s240 = scalar_lea.vmem %s2, %s239
        %p241 = pneg %p94
        %p242 = pneg %p91
        %s243 = sand.u32 %s107, 1
        %s244 = scalar_lea.sflag [#allocation4], %s243
        %s245 = sand.u32 %s107, 1
        %s246 = smul.addr %s245, 32
        %s247 = scalar_lea.vmem [#allocation3], %s246
        %p248 = pneg %p120
        %p249 = pneg %p117
        %p250 = pneg %p146
        %p251 = pneg %p143
        %s252 = sand.u32 %s133, 1
        %s253 = scalar_lea.sflag [#allocation5], %s252
        %s254 = sand.u32 %s133, 1
        %s255 = smul.addr %s254, 32
        %s256 = scalar_lea.vmem [#allocation6], %s255
        %p257 = scmp.lt.s32.totalorder %s21, 1
        %s258 = scalar_select %p257, %s21, 1
        %s259 = smul.addr %s258, 16
        %s260 = smul.addr %s259, 8
        %s261 = scalar_lea.vmem %s0, %s260
        %p262 = scmp.lt.s32.totalorder %s21, 1
        %s263 = scalar_select %p262, %s21, 1
        %s264 = smul.addr %s263, 16
        %s265 = smul.addr %s264, 8
        %s266 = scalar_lea.vmem %s1, %s265
        %p267 = scmp.lt.s32.totalorder %s21, 1
        %s268 = scalar_select %p267, %s21, 1
        %s269 = scalar_lea.vmem %s2, %s268
        %v270 = vld [vmem:[%s266] sm:$0xff]
        %v271 = vld [vmem:[%s266 + $0x8] sm:$0xff]
        %v272 = vld [vmem:[%s266 + $0x10] sm:$0xff]
        %v273 = vld [vmem:[%s266 + $0x18] sm:$0xff]
        %v274 = vld [vmem:[%s266 + $0x20] sm:$0xff]
        %v275 = vld [vmem:[%s266 + $0x28] sm:$0xff]
        %v276 = vld [vmem:[%s266 + $0x30] sm:$0xff]
        %v277 = vld [vmem:[%s266 + $0x38] sm:$0xff]
        %v278 = vld [vmem:[%s266 + $0x40] sm:$0xff]
        %v279 = vld [vmem:[%s266 + $0x48] sm:$0xff]
        %v280 = vld [vmem:[%s266 + $0x50] sm:$0xff]
        %v281 = vld [vmem:[%s266 + $0x58] sm:$0xff]
        %v282 = vld [vmem:[%s266 + $0x60] sm:$0xff]
        %v283 = vld [vmem:[%s266 + $0x68] sm:$0xff]
        %v284 = vld [vmem:[%s266 + $0x70] sm:$0xff]
        %v285 = vld [vmem:[%s266 + $0x78] sm:$0xff]
        %v286 = vld [vmem:[%s261] sm:$0xff]
        %v287 = vld [vmem:[%s261 + $0x8] sm:$0xff]
        %v288 = vld [vmem:[%s261 + $0x10] sm:$0xff]
        %v289 = vld [vmem:[%s261 + $0x18] sm:$0xff]
        %v290 = vld [vmem:[%s261 + $0x20] sm:$0xff]
        %v291 = vld [vmem:[%s261 + $0x28] sm:$0xff]
        %v292 = vld [vmem:[%s261 + $0x30] sm:$0xff]
        %v293 = vld [vmem:[%s261 + $0x38] sm:$0xff]
        %v294 = vld [vmem:[%s261 + $0x40] sm:$0xff]
        %v295 = vld [vmem:[%s261 + $0x48] sm:$0xff]
        %v296 = vld [vmem:[%s261 + $0x50] sm:$0xff]
        %v297 = vld [vmem:[%s261 + $0x58] sm:$0xff]
        %v298 = vld [vmem:[%s261 + $0x60] sm:$0xff]
        %v299 = vld [vmem:[%s261 + $0x68] sm:$0xff]
        %v300 = vld [vmem:[%s261 + $0x70] sm:$0xff]
        %v301 = vld [vmem:[%s261 + $0x78] sm:$0xff]
        %303 = vset.pattern.permute.xlu0 0
        %304 = vperm.xlu0 %303, %v270
        %v305 = vpop.permute.xlu0 %304
        %308 = vset.pattern.permute.xlu0 0
        %309 = vperm.xlu0 %308, %v271
        %v310 = vpop.permute.xlu0 %309
        %313 = vset.pattern.permute.xlu0 0
        %314 = vperm.xlu0 %313, %v272
        %v315 = vpop.permute.xlu0 %314
        %318 = vset.pattern.permute.xlu0 0
        %319 = vperm.xlu0 %318, %v273
        %v320 = vpop.permute.xlu0 %319
        %323 = vset.pattern.permute.xlu0 0
        %324 = vperm.xlu0 %323, %v274
        %v325 = vpop.permute.xlu0 %324
        %328 = vset.pattern.permute.xlu0 0
        %329 = vperm.xlu0 %328, %v275
        %v330 = vpop.permute.xlu0 %329
        %333 = vset.pattern.permute.xlu0 0
        %334 = vperm.xlu0 %333, %v276
        %v335 = vpop.permute.xlu0 %334
        %338 = vset.pattern.permute.xlu0 0
        %339 = vperm.xlu0 %338, %v277
        %v340 = vpop.permute.xlu0 %339
        %343 = vset.pattern.permute.xlu0 0
        %344 = vperm.xlu0 %343, %v278
        %v345 = vpop.permute.xlu0 %344
        %348 = vset.pattern.permute.xlu0 0
        %349 = vperm.xlu0 %348, %v279
        %v350 = vpop.permute.xlu0 %349
        %353 = vset.pattern.permute.xlu0 0
        %354 = vperm.xlu0 %353, %v280
        %v355 = vpop.permute.xlu0 %354
        %358 = vset.pattern.permute.xlu0 0
        %359 = vperm.xlu0 %358, %v281
        %v360 = vpop.permute.xlu0 %359
        %363 = vset.pattern.permute.xlu0 0
        %364 = vperm.xlu0 %363, %v282
        %v365 = vpop.permute.xlu0 %364
        %368 = vset.pattern.permute.xlu0 0
        %369 = vperm.xlu0 %368, %v283
        %v370 = vpop.permute.xlu0 %369
        %373 = vset.pattern.permute.xlu0 0
        %374 = vperm.xlu0 %373, %v284
        %v375 = vpop.permute.xlu0 %374
        %378 = vset.pattern.permute.xlu0 0
        %379 = vperm.xlu0 %378, %v285
        %v380 = vpop.permute.xlu0 %379
        %v382 = vmul.f32 %v305, %v286
        %v383 = vmul.f32 %v310, %v287
        %v384 = vmul.f32 %v315, %v288
        %v385 = vmul.f32 %v320, %v289
        %v386 = vmul.f32 %v325, %v290
        %v387 = vmul.f32 %v330, %v291
        %v388 = vmul.f32 %v335, %v292
        %v389 = vmul.f32 %v340, %v293
        %v390 = vmul.f32 %v345, %v294
        %v391 = vmul.f32 %v350, %v295
        %v392 = vmul.f32 %v355, %v296
        %v393 = vmul.f32 %v360, %v297
        %v394 = vmul.f32 %v365, %v298
        %v395 = vmul.f32 %v370, %v299
        %v396 = vmul.f32 %v375, %v300
        %v397 = vmul.f32 %v380, %v301
        %v398 = vld [vmem:[%s269] sm:$0x1]
        %v400 = vlaneseq
        %v401 = vshrl.u32 %v400, 7
        %v402 = vsub.s32 0, %v401
        %v403 = vrot.slane %v398, %v402
        %v405 = vmul.f32 %v382, %v403
        %v406 = vmul.f32 %v383, %v403
        %v407 = vmul.f32 %v384, %v403
        %v408 = vmul.f32 %v385, %v403
        %v409 = vmul.f32 %v386, %v403
        %v410 = vmul.f32 %v387, %v403
        %v411 = vmul.f32 %v388, %v403
        %v412 = vmul.f32 %v389, %v403
        %v413 = vmul.f32 %v390, %v403
        %v414 = vmul.f32 %v391, %v403
        %v415 = vmul.f32 %v392, %v403
        %v416 = vmul.f32 %v393, %v403
        %v417 = vmul.f32 %v394, %v403
        %v418 = vmul.f32 %v395, %v403
        %v419 = vmul.f32 %v396, %v403
        %v420 = vmul.f32 %v397, %v403
        %v421 = vmul.f32 %v405, 0.9
        %v422 = vmul.f32 %v406, 0.9
        %v423 = vmul.f32 %v407, 0.9
        %v424 = vmul.f32 %v408, 0.9
        %v425 = vmul.f32 %v409, 0.9
        %v426 = vmul.f32 %v410, 0.9
        %v427 = vmul.f32 %v411, 0.9
        %v428 = vmul.f32 %v412, 0.9
        %v429 = vmul.f32 %v413, 0.9
        %v430 = vmul.f32 %v414, 0.9
        %v431 = vmul.f32 %v415, 0.9
        %v432 = vmul.f32 %v416, 0.9
        %v433 = vmul.f32 %v417, 0.9
        %v434 = vmul.f32 %v418, 0.9
        %v435 = vmul.f32 %v419, 0.9
        %v436 = vmul.f32 %v420, 0.9
        %437 = vst [vmem:[#allocation2] sm:$0xff] %v421
        %438 = vst [vmem:[#allocation2 + $0x8] sm:$0xff] %v422
        %439 = vst [vmem:[#allocation2 + $0x10] sm:$0xff] %v423
        %440 = vst [vmem:[#allocation2 + $0x18] sm:$0xff] %v424
        %441 = vst [vmem:[#allocation2 + $0x20] sm:$0xff] %v425
        %442 = vst [vmem:[#allocation2 + $0x28] sm:$0xff] %v426
        %443 = vst [vmem:[#allocation2 + $0x30] sm:$0xff] %v427
        %444 = vst [vmem:[#allocation2 + $0x38] sm:$0xff] %v428
        %445 = vst [vmem:[#allocation2 + $0x40] sm:$0xff] %v429
        %446 = vst [vmem:[#allocation2 + $0x48] sm:$0xff] %v430
        %447 = vst [vmem:[#allocation2 + $0x50] sm:$0xff] %v431
        %448 = vst [vmem:[#allocation2 + $0x58] sm:$0xff] %v432
        %449 = vst [vmem:[#allocation2 + $0x60] sm:$0xff] %v433
        %450 = vst [vmem:[#allocation2 + $0x68] sm:$0xff] %v434
        %451 = vst [vmem:[#allocation2 + $0x70] sm:$0xff] %v435
        %452 = vst [vmem:[#allocation2 + $0x78] sm:$0xff] %v436
        %v453 = vld [vmem:[%s219] sm:$0xff]
        %v454 = vld [vmem:[%s219 + $0x8] sm:$0xff]
        %v455 = vld [vmem:[%s219 + $0x10] sm:$0xff]
        %v456 = vld [vmem:[%s219 + $0x18] sm:$0xff]
        %v457 = vmul.f32 %v453, 0.1
        %v458 = vmul.f32 %v454, 0.1
        %v459 = vmul.f32 %v455, 0.1
        %v460 = vmul.f32 %v456, 0.1
        %v461 = vld [vmem:[#allocation2] sm:$0xff]
        %v462 = vld [vmem:[#allocation2 + $0x8] sm:$0xff]
        %v463 = vld [vmem:[#allocation2 + $0x10] sm:$0xff]
        %v464 = vld [vmem:[#allocation2 + $0x18] sm:$0xff]
        %v465 = vld [vmem:[#allocation2 + $0x20] sm:$0xff]
        %v466 = vld [vmem:[#allocation2 + $0x28] sm:$0xff]
        %v467 = vld [vmem:[#allocation2 + $0x30] sm:$0xff]
        %v468 = vld [vmem:[#allocation2 + $0x38] sm:$0xff]
        %v469 = vld [vmem:[#allocation2 + $0x40] sm:$0xff]
        %v470 = vld [vmem:[#allocation2 + $0x48] sm:$0xff]
        %v471 = vld [vmem:[#allocation2 + $0x50] sm:$0xff]
        %v472 = vld [vmem:[#allocation2 + $0x58] sm:$0xff]
        %v473 = vld [vmem:[#allocation2 + $0x60] sm:$0xff]
        %v474 = vld [vmem:[#allocation2 + $0x68] sm:$0xff]
        %v475 = vld [vmem:[#allocation2 + $0x70] sm:$0xff]
        %v476 = vld [vmem:[#allocation2 + $0x78] sm:$0xff]
        %477 = vmatprep.subr.mxu0 0.0
        %478 = vmatpush1.msra.mxu0 %v461
        %479 = vmatprep.subr.mxu0 0.0
        %480 = vmatpush1.msra.mxu0 %v462
        %481 = vmatprep.subr.mxu0 0.0
        %482 = vmatpush1.msra.mxu0 %v463
        %483 = vmatprep.subr.mxu0 0.0
        %484 = vmatpush1.msra.mxu0 %v464
        %485 = vmatprep.subr.mxu0 0.0
        %486 = vmatpush1.msra.mxu0 %v465
        %487 = vmatprep.subr.mxu0 0.0
        %488 = vmatpush1.msra.mxu0 %v466
        %489 = vmatprep.subr.mxu0 0.0
        %490 = vmatpush1.msra.mxu0 %v467
        %491 = vmatprep.subr.mxu0 0.0
        %492 = vmatpush1.msra.mxu0 %v468
        %493 = vmatprep.subr.mxu0 0.0
        %494 = vmatpush1.msra.mxu0 %v469
        %495 = vmatprep.subr.mxu0 0.0
        %496 = vmatpush1.msra.mxu0 %v470
        %497 = vmatprep.subr.mxu0 0.0
        %498 = vmatpush1.msra.mxu0 %v471
        %499 = vmatprep.subr.mxu0 0.0
        %500 = vmatpush1.msra.mxu0 %v472
        %501 = vmatprep.subr.mxu0 0.0
        %502 = vmatpush1.msra.mxu0 %v473
        %503 = vmatprep.subr.mxu0 0.0
        %504 = vmatpush1.msra.mxu0 %v474
        %505 = vmatprep.subr.mxu0 0.0
        %506 = vmatpush1.msra.mxu0 %v475
        %507 = vmatprep.subr.mxu0 0.0
        %508 = vmatpush1.msra.mxu0 %v476
        %509 = vmatprep.subr.mxu0 0.0
        %510 = vmatpush1.msra.mxu0 0.0
        %511 = vmatprep.subr.mxu0 0.0
        %512 = vmatpush1.msra.mxu0 0.0
        %513 = vmatprep.subr.mxu0 0.0
        %514 = vmatpush1.msra.mxu0 0.0
        %515 = vmatprep.subr.mxu0 0.0
        %516 = vmatpush1.msra.mxu0 0.0
        %517 = vmatprep.subr.mxu0 0.0
        %518 = vmatpush1.msra.mxu0 0.0
        %519 = vmatprep.subr.mxu0 0.0
        %520 = vmatpush1.msra.mxu0 0.0
        %521 = vmatprep.subr.mxu0 0.0
        %522 = vmatpush1.msra.mxu0 0.0
        %523 = vmatprep.subr.mxu0 0.0
        %524 = vmatpush1.msra.mxu0 0.0
        %525 = vmatprep.subr.mxu0 0.0
        %526 = vmatpush1.msra.mxu0 0.0
        %527 = vmatprep.subr.mxu0 0.0
        %528 = vmatpush1.msra.mxu0 0.0
        %529 = vmatprep.subr.mxu0 0.0
        %530 = vmatpush1.msra.mxu0 0.0
        %531 = vmatprep.subr.mxu0 0.0
        %532 = vmatpush1.msra.mxu0 0.0
        %533 = vmatprep.subr.mxu0 0.0
        %534 = vmatpush1.msra.mxu0 0.0
        %535 = vmatprep.subr.mxu0 0.0
        %536 = vmatpush1.msra.mxu0 0.0
        %537 = vmatprep.subr.mxu0 0.0
        %538 = vmatpush1.msra.mxu0 0.0
        %539 = vmatprep.subr.mxu0 0.0
        %540 = vmatpush1.msra.mxu0 0.0
        %541 = vmatprep.mubr.f32.mxu0 0.0
        %542 = vmatmul.mubr.f32.gmra.mrb[0].mxu0 %v453
        %v543 = vpop.f32.mrb[0].mxu0
        %v544 = vadd.f32 %v457, %v543
        %v545 = vpop.f32.mrb[0].mxu0
        %546 = vmatprep.mubr.f32.mxu0 0.0
        %547 = vmatmul.mubr.f32.gmra.mrb[0].mxu0 %v454
        %v548 = vpop.f32.mrb[0].mxu0
        %v549 = vadd.f32 %v458, %v548
        %v550 = vpop.f32.mrb[0].mxu0
        %551 = vmatprep.mubr.f32.mxu0 0.0
        %552 = vmatmul.mubr.f32.gmra.mrb[0].mxu0 %v455
        %v553 = vpop.f32.mrb[0].mxu0
        %v554 = vadd.f32 %v459, %v553
        %v555 = vpop.f32.mrb[0].mxu0
        %556 = vmatprep.mubr.f32.mxu0 0.0
        %557 = vmatmul.mubr.f32.gmra.mrb[0].mxu0 %v456
        %v558 = vpop.f32.mrb[0].mxu0
        %v559 = vadd.f32 %v460, %v558
        %v560 = vpop.f32.mrb[0].mxu0
        %561 = vdwg.mxu0
        %562 = vmatprep.subr.mxu0 0.0
        %563 = vmatpush1.msra.mxu0 %v461
        %564 = vmatprep.subr.mxu0 0.0
        %565 = vmatpush1.msra.mxu0 %v462
        %566 = vmatprep.subr.mxu0 0.0
        %567 = vmatpush1.msra.mxu0 %v463
        %568 = vmatprep.subr.mxu0 0.0
        %569 = vmatpush1.msra.mxu0 %v464
        %570 = vmatprep.subr.mxu0 0.0
        %571 = vmatpush1.msra.mxu0 %v465
        %572 = vmatprep.subr.mxu0 0.0
        %573 = vmatpush1.msra.mxu0 %v466
        %574 = vmatprep.subr.mxu0 0.0
        %575 = vmatpush1.msra.mxu0 %v467
        %576 = vmatprep.subr.mxu0 0.0
        %577 = vmatpush1.msra.mxu0 %v468
        %578 = vmatprep.subr.mxu0 0.0
        %579 = vmatpush1.msra.mxu0 %v469
        %580 = vmatprep.subr.mxu0 0.0
        %581 = vmatpush1.msra.mxu0 %v470
        %582 = vmatprep.subr.mxu0 0.0
        %583 = vmatpush1.msra.mxu0 %v471
        %584 = vmatprep.subr.mxu0 0.0
        %585 = vmatpush1.msra.mxu0 %v472
        %586 = vmatprep.subr.mxu0 0.0
        %587 = vmatpush1.msra.mxu0 %v473
        %588 = vmatprep.subr.mxu0 0.0
        %589 = vmatpush1.msra.mxu0 %v474
        %590 = vmatprep.subr.mxu0 0.0
        %591 = vmatpush1.msra.mxu0 %v475
        %592 = vmatprep.subr.mxu0 0.0
        %593 = vmatpush1.msra.mxu0 %v476
        %594 = vmatprep.subr.mxu0 0.0
        %595 = vmatpush1.msra.mxu0 0.0
        %596 = vmatprep.subr.mxu0 0.0
        %597 = vmatpush1.msra.mxu0 0.0
        %598 = vmatprep.subr.mxu0 0.0
        %599 = vmatpush1.msra.mxu0 0.0
        %600 = vmatprep.subr.mxu0 0.0
        %601 = vmatpush1.msra.mxu0 0.0
        %602 = vmatprep.subr.mxu0 0.0
        %603 = vmatpush1.msra.mxu0 0.0
        %604 = vmatprep.subr.mxu0 0.0
        %605 = vmatpush1.msra.mxu0 0.0
        %606 = vmatprep.subr.mxu0 0.0
        %607 = vmatpush1.msra.mxu0 0.0
        %608 = vmatprep.subr.mxu0 0.0
        %609 = vmatpush1.msra.mxu0 0.0
        %610 = vmatprep.subr.mxu0 0.0
        %611 = vmatpush1.msra.mxu0 0.0
        %612 = vmatprep.subr.mxu0 0.0
        %613 = vmatpush1.msra.mxu0 0.0
        %614 = vmatprep.subr.mxu0 0.0
        %615 = vmatpush1.msra.mxu0 0.0
        %616 = vmatprep.subr.mxu0 0.0
        %617 = vmatpush1.msra.mxu0 0.0
        %618 = vmatprep.subr.mxu0 0.0
        %619 = vmatpush1.msra.mxu0 0.0
        %620 = vmatprep.subr.mxu0 0.0
        %621 = vmatpush1.msra.mxu0 0.0
        %622 = vmatprep.subr.mxu0 0.0
        %623 = vmatpush1.msra.mxu0 0.0
        %624 = vmatprep.subr.mxu0 0.0
        %625 = vmatpush1.msra.mxu0 0.0
        %626 = vmatprep.mubr.f32.mxu0 0.0
        %627 = vmatmul.mubr.f32.gmra.mrb[0].mxu0 %v544
        %v628 = vpop.f32.mrb[0].mxu0
        %v629 = vadd.f32 %v457, %v628
        %v630 = vpop.f32.mrb[0].mxu0
        %631 = vmatprep.mubr.f32.mxu0 0.0
        %632 = vmatmul.mubr.f32.gmra.mrb[0].mxu0 %v549
        %v633 = vpop.f32.mrb[0].mxu0
        %v634 = vadd.f32 %v458, %v633
        %v635 = vpop.f32.mrb[0].mxu0
        %636 = vmatprep.mubr.f32.mxu0 0.0
        %637 = vmatmul.mubr.f32.gmra.mrb[0].mxu0 %v554
        %v638 = vpop.f32.mrb[0].mxu0
        %v639 = vadd.f32 %v459, %v638
        %v640 = vpop.f32.mrb[0].mxu0
        %641 = vmatprep.mubr.f32.mxu0 0.0
        %642 = vmatmul.mubr.f32.gmra.mrb[0].mxu0 %v559
        %v643 = vpop.f32.mrb[0].mxu0
        %v644 = vadd.f32 %v460, %v643
        %v645 = vpop.f32.mrb[0].mxu0
        %646 = vdwg.mxu0
        %647 = vmatprep.subr.mxu0 0.0
        %648 = vmatpush1.msra.mxu0 %v461
        %649 = vmatprep.subr.mxu0 0.0
        %650 = vmatpush1.msra.mxu0 %v462
        %651 = vmatprep.subr.mxu0 0.0
        %652 = vmatpush1.msra.mxu0 %v463
        %653 = vmatprep.subr.mxu0 0.0
        %654 = vmatpush1.msra.mxu0 %v464
        %655 = vmatprep.subr.mxu0 0.0
        %656 = vmatpush1.msra.mxu0 %v465
        %657 = vmatprep.subr.mxu0 0.0
        %658 = vmatpush1.msra.mxu0 %v466
        %659 = vmatprep.subr.mxu0 0.0
        %660 = vmatpush1.msra.mxu0 %v467
        %661 = vmatprep.subr.mxu0 0.0
        %662 = vmatpush1.msra.mxu0 %v468
        %663 = vmatprep.subr.mxu0 0.0
        %664 = vmatpush1.msra.mxu0 %v469
        %665 = vmatprep.subr.mxu0 0.0
        %666 = vmatpush1.msra.mxu0 %v470
        %667 = vmatprep.subr.mxu0 0.0
        %668 = vmatpush1.msra.mxu0 %v471
        %669 = vmatprep.subr.mxu0 0.0
        %670 = vmatpush1.msra.mxu0 %v472
        %671 = vmatprep.subr.mxu0 0.0
        %672 = vmatpush1.msra.mxu0 %v473
        %673 = vmatprep.subr.mxu0 0.0
        %674 = vmatpush1.msra.mxu0 %v474
        %675 = vmatprep.subr.mxu0 0.0
        %676 = vmatpush1.msra.mxu0 %v475
        %677 = vmatprep.subr.mxu0 0.0
        %678 = vmatpush1.msra.mxu0 %v476
        %679 = vmatprep.subr.mxu0 0.0
        %680 = vmatpush1.msra.mxu0 0.0
        %681 = vmatprep.subr.mxu0 0.0
        %682 = vmatpush1.msra.mxu0 0.0
        %683 = vmatprep.subr.mxu0 0.0
        %684 = vmatpush1.msra.mxu0 0.0
        %685 = vmatprep.subr.mxu0 0.0
        %686 = vmatpush1.msra.mxu0 0.0
        %687 = vmatprep.subr.mxu0 0.0
        %688 = vmatpush1.msra.mxu0 0.0
        %689 = vmatprep.subr.mxu0 0.0
        %690 = vmatpush1.msra.mxu0 0.0
        %691 = vmatprep.subr.mxu0 0.0
        %692 = vmatpush1.msra.mxu0 0.0
        %693 = vmatprep.subr.mxu0 0.0
        %694 = vmatpush1.msra.mxu0 0.0
        %695 = vmatprep.subr.mxu0 0.0
        %696 = vmatpush1.msra.mxu0 0.0
        %697 = vmatprep.subr.mxu0 0.0
        %698 = vmatpush1.msra.mxu0 0.0
        %699 = vmatprep.subr.mxu0 0.0
        %700 = vmatpush1.msra.mxu0 0.0
        %701 = vmatprep.subr.mxu0 0.0
        %702 = vmatpush1.msra.mxu0 0.0
        %703 = vmatprep.subr.mxu0 0.0
        %704 = vmatpush1.msra.mxu0 0.0
        %705 = vmatprep.subr.mxu0 0.0
        %706 = vmatpush1.msra.mxu0 0.0
        %707 = vmatprep.subr.mxu0 0.0
        %708 = vmatpush1.msra.mxu0 0.0
        %709 = vmatprep.subr.mxu0 0.0
        %710 = vmatpush1.msra.mxu0 0.0
        %711 = vmatprep.mubr.f32.mxu0 0.0
        %712 = vmatmul.mubr.f32.gmra.mrb[0].mxu0 %v629
        %v713 = vpop.f32.mrb[0].mxu0
        %v714 = vadd.f32 %v457, %v713
        %v715 = vpop.f32.mrb[0].mxu0
        %716 = vmatprep.mubr.f32.mxu0 0.0
        %717 = vmatmul.mubr.f32.gmra.mrb[0].mxu0 %v634
        %v718 = vpop.f32.mrb[0].mxu0
        %v719 = vadd.f32 %v458, %v718
        %v720 = vpop.f32.mrb[0].mxu0
        %721 = vmatprep.mubr.f32.mxu0 0.0
        %722 = vmatmul.mubr.f32.gmra.mrb[0].mxu0 %v639
        %v723 = vpop.f32.mrb[0].mxu0
        %v724 = vadd.f32 %v459, %v723
        %v725 = vpop.f32.mrb[0].mxu0
        %726 = vmatprep.mubr.f32.mxu0 0.0
        %727 = vmatmul.mubr.f32.gmra.mrb[0].mxu0 %v644
        %v728 = vpop.f32.mrb[0].mxu0
        %v729 = vadd.f32 %v460, %v728
        %v730 = vpop.f32.mrb[0].mxu0
        %731 = vdwg.mxu0
        %732 = vmatprep.subr.mxu0 0.0
        %733 = vmatpush1.msra.mxu0 %v461
        %734 = vmatprep.subr.mxu0 0.0
        %735 = vmatpush1.msra.mxu0 %v462
        %736 = vmatprep.subr.mxu0 0.0
        %737 = vmatpush1.msra.mxu0 %v463
        %738 = vmatprep.subr.mxu0 0.0
        %739 = vmatpush1.msra.mxu0 %v464
        %740 = vmatprep.subr.mxu0 0.0
        %741 = vmatpush1.msra.mxu0 %v465
        %742 = vmatprep.subr.mxu0 0.0
        %743 = vmatpush1.msra.mxu0 %v466
        %744 = vmatprep.subr.mxu0 0.0
        %745 = vmatpush1.msra.mxu0 %v467
        %746 = vmatprep.subr.mxu0 0.0
        %747 = vmatpush1.msra.mxu0 %v468
        %748 = vmatprep.subr.mxu0 0.0
        %749 = vmatpush1.msra.mxu0 %v469
        %750 = vmatprep.subr.mxu0 0.0
        %751 = vmatpush1.msra.mxu0 %v470
        %752 = vmatprep.subr.mxu0 0.0
        %753 = vmatpush1.msra.mxu0 %v471
        %754 = vmatprep.subr.mxu0 0.0
        %755 = vmatpush1.msra.mxu0 %v472
        %756 = vmatprep.subr.mxu0 0.0
        %757 = vmatpush1.msra.mxu0 %v473
        %758 = vmatprep.subr.mxu0 0.0
        %759 = vmatpush1.msra.mxu0 %v474
        %760 = vmatprep.subr.mxu0 0.0
        %761 = vmatpush1.msra.mxu0 %v475
        %762 = vmatprep.subr.mxu0 0.0
        %763 = vmatpush1.msra.mxu0 %v476
        %764 = vmatprep.subr.mxu0 0.0
        %765 = vmatpush1.msra.mxu0 0.0
        %766 = vmatprep.subr.mxu0 0.0
        %767 = vmatpush1.msra.mxu0 0.0
        %768 = vmatprep.subr.mxu0 0.0
        %769 = vmatpush1.msra.mxu0 0.0
        %770 = vmatprep.subr.mxu0 0.0
        %771 = vmatpush1.msra.mxu0 0.0
        %772 = vmatprep.subr.mxu0 0.0
        %773 = vmatpush1.msra.mxu0 0.0
        %774 = vmatprep.subr.mxu0 0.0
        %775 = vmatpush1.msra.mxu0 0.0
        %776 = vmatprep.subr.mxu0 0.0
        %777 = vmatpush1.msra.mxu0 0.0
        %778 = vmatprep.subr.mxu0 0.0
        %779 = vmatpush1.msra.mxu0 0.0
        %780 = vmatprep.subr.mxu0 0.0
        %781 = vmatpush1.msra.mxu0 0.0
        %782 = vmatprep.subr.mxu0 0.0
        %783 = vmatpush1.msra.mxu0 0.0
        %784 = vmatprep.subr.mxu0 0.0
        %785 = vmatpush1.msra.mxu0 0.0
        %786 = vmatprep.subr.mxu0 0.0
        %787 = vmatpush1.msra.mxu0 0.0
        %788 = vmatprep.subr.mxu0 0.0
        %789 = vmatpush1.msra.mxu0 0.0
        %790 = vmatprep.subr.mxu0 0.0
        %791 = vmatpush1.msra.mxu0 0.0
        %792 = vmatprep.subr.mxu0 0.0
        %793 = vmatpush1.msra.mxu0 0.0
        %794 = vmatprep.subr.mxu0 0.0
        %795 = vmatpush1.msra.mxu0 0.0
        %796 = vmatprep.mubr.f32.mxu0 0.0
        %797 = vmatmul.mubr.f32.gmra.mrb[0].mxu0 %v714
        %v798 = vpop.f32.mrb[0].mxu0
        %v799 = vadd.f32 %v457, %v798
        %v800 = vpop.f32.mrb[0].mxu0
        %801 = vmatprep.mubr.f32.mxu0 0.0
        %802 = vmatmul.mubr.f32.gmra.mrb[0].mxu0 %v719
        %v803 = vpop.f32.mrb[0].mxu0
        %v804 = vadd.f32 %v458, %v803
        %v805 = vpop.f32.mrb[0].mxu0
        %806 = vmatprep.mubr.f32.mxu0 0.0
        %807 = vmatmul.mubr.f32.gmra.mrb[0].mxu0 %v724
        %v808 = vpop.f32.mrb[0].mxu0
        %v809 = vadd.f32 %v459, %v808
        %v810 = vpop.f32.mrb[0].mxu0
        %811 = vmatprep.mubr.f32.mxu0 0.0
        %812 = vmatmul.mubr.f32.gmra.mrb[0].mxu0 %v729
        %v813 = vpop.f32.mrb[0].mxu0
        %v814 = vadd.f32 %v460, %v813
        %v815 = vpop.f32.mrb[0].mxu0
        %816 = vdwg.mxu0
        %817 = vmatprep.subr.mxu0 0.0
        %818 = vmatpush1.msra.mxu0 %v461
        %819 = vmatprep.subr.mxu0 0.0
        %820 = vmatpush1.msra.mxu0 %v462
        %821 = vmatprep.subr.mxu0 0.0
        %822 = vmatpush1.msra.mxu0 %v463
        %823 = vmatprep.subr.mxu0 0.0
        %824 = vmatpush1.msra.mxu0 %v464
        %825 = vmatprep.subr.mxu0 0.0
        %826 = vmatpush1.msra.mxu0 %v465
        %827 = vmatprep.subr.mxu0 0.0
        %828 = vmatpush1.msra.mxu0 %v466
        %829 = vmatprep.subr.mxu0 0.0
        %830 = vmatpush1.msra.mxu0 %v467
        %831 = vmatprep.subr.mxu0 0.0
        %832 = vmatpush1.msra.mxu0 %v468
        %833 = vmatprep.subr.mxu0 0.0
        %834 = vmatpush1.msra.mxu0 %v469
        %835 = vmatprep.subr.mxu0 0.0
        %836 = vmatpush1.msra.mxu0 %v470
        %837 = vmatprep.subr.mxu0 0.0
        %838 = vmatpush1.msra.mxu0 %v471
        %839 = vmatprep.subr.mxu0 0.0
        %840 = vmatpush1.msra.mxu0 %v472
        %841 = vmatprep.subr.mxu0 0.0
        %842 = vmatpush1.msra.mxu0 %v473
        %843 = vmatprep.subr.mxu0 0.0
        %844 = vmatpush1.msra.mxu0 %v474
        %845 = vmatprep.subr.mxu0 0.0
        %846 = vmatpush1.msra.mxu0 %v475
        %847 = vmatprep.subr.mxu0 0.0
        %848 = vmatpush1.msra.mxu0 %v476
        %849 = vmatprep.subr.mxu0 0.0
        %850 = vmatpush1.msra.mxu0 0.0
        %851 = vmatprep.subr.mxu0 0.0
        %852 = vmatpush1.msra.mxu0 0.0
        %853 = vmatprep.subr.mxu0 0.0
        %854 = vmatpush1.msra.mxu0 0.0
        %855 = vmatprep.subr.mxu0 0.0
        %856 = vmatpush1.msra.mxu0 0.0
        %857 = vmatprep.subr.mxu0 0.0
        %858 = vmatpush1.msra.mxu0 0.0
        %859 = vmatprep.subr.mxu0 0.0
        %860 = vmatpush1.msra.mxu0 0.0
        %861 = vmatprep.subr.mxu0 0.0
        %862 = vmatpush1.msra.mxu0 0.0
        %863 = vmatprep.subr.mxu0 0.0
        %864 = vmatpush1.msra.mxu0 0.0
        %865 = vmatprep.subr.mxu0 0.0
        %866 = vmatpush1.msra.mxu0 0.0
        %867 = vmatprep.subr.mxu0 0.0
        %868 = vmatpush1.msra.mxu0 0.0
        %869 = vmatprep.subr.mxu0 0.0
        %870 = vmatpush1.msra.mxu0 0.0
        %871 = vmatprep.subr.mxu0 0.0
        %872 = vmatpush1.msra.mxu0 0.0
        %873 = vmatprep.subr.mxu0 0.0
        %874 = vmatpush1.msra.mxu0 0.0
        %875 = vmatprep.subr.mxu0 0.0
        %876 = vmatpush1.msra.mxu0 0.0
        %877 = vmatprep.subr.mxu0 0.0
        %878 = vmatpush1.msra.mxu0 0.0
        %879 = vmatprep.subr.mxu0 0.0
        %880 = vmatpush1.msra.mxu0 0.0
        %881 = vmatprep.mubr.f32.mxu0 0.0
        %882 = vmatmul.mubr.f32.gmra.mrb[0].mxu0 %v799
        %v883 = vpop.f32.mrb[0].mxu0
        %v884 = vadd.f32 %v457, %v883
        %v885 = vpop.f32.mrb[0].mxu0
        %886 = vmatprep.mubr.f32.mxu0 0.0
        %887 = vmatmul.mubr.f32.gmra.mrb[0].mxu0 %v804
        %v888 = vpop.f32.mrb[0].mxu0
        %v889 = vadd.f32 %v458, %v888
        %v890 = vpop.f32.mrb[0].mxu0
        %891 = vmatprep.mubr.f32.mxu0 0.0
        %892 = vmatmul.mubr.f32.gmra.mrb[0].mxu0 %v809
        %v893 = vpop.f32.mrb[0].mxu0
        %v894 = vadd.f32 %v459, %v893
        %v895 = vpop.f32.mrb[0].mxu0
        %896 = vmatprep.mubr.f32.mxu0 0.0
        %897 = vmatmul.mubr.f32.gmra.mrb[0].mxu0 %v814
        %v898 = vpop.f32.mrb[0].mxu0
        %v899 = vadd.f32 %v460, %v898
        %v900 = vpop.f32.mrb[0].mxu0
        %901 = vdwg.mxu0
        %902 = vmatprep.subr.mxu0 0.0
        %903 = vmatpush1.msra.mxu0 %v461
        %904 = vmatprep.subr.mxu0 0.0
        %905 = vmatpush1.msra.mxu0 %v462
        %906 = vmatprep.subr.mxu0 0.0
        %907 = vmatpush1.msra.mxu0 %v463
        %908 = vmatprep.subr.mxu0 0.0
        %909 = vmatpush1.msra.mxu0 %v464
        %910 = vmatprep.subr.mxu0 0.0
        %911 = vmatpush1.msra.mxu0 %v465
        %912 = vmatprep.subr.mxu0 0.0
        %913 = vmatpush1.msra.mxu0 %v466
        %914 = vmatprep.subr.mxu0 0.0
        %915 = vmatpush1.msra.mxu0 %v467
        %916 = vmatprep.subr.mxu0 0.0
        %917 = vmatpush1.msra.mxu0 %v468
        %918 = vmatprep.subr.mxu0 0.0
        %919 = vmatpush1.msra.mxu0 %v469
        %920 = vmatprep.subr.mxu0 0.0
        %921 = vmatpush1.msra.mxu0 %v470
        %922 = vmatprep.subr.mxu0 0.0
        %923 = vmatpush1.msra.mxu0 %v471
        %924 = vmatprep.subr.mxu0 0.0
        %925 = vmatpush1.msra.mxu0 %v472
        %926 = vmatprep.subr.mxu0 0.0
        %927 = vmatpush1.msra.mxu0 %v473
        %928 = vmatprep.subr.mxu0 0.0
        %929 = vmatpush1.msra.mxu0 %v474
        %930 = vmatprep.subr.mxu0 0.0
        %931 = vmatpush1.msra.mxu0 %v475
        %932 = vmatprep.subr.mxu0 0.0
        %933 = vmatpush1.msra.mxu0 %v476
        %934 = vmatprep.subr.mxu0 0.0
        %935 = vmatpush1.msra.mxu0 0.0
        %936 = vmatprep.subr.mxu0 0.0
        %937 = vmatpush1.msra.mxu0 0.0
        %938 = vmatprep.subr.mxu0 0.0
        %939 = vmatpush1.msra.mxu0 0.0
        %940 = vmatprep.subr.mxu0 0.0
        %941 = vmatpush1.msra.mxu0 0.0
        %942 = vmatprep.subr.mxu0 0.0
        %943 = vmatpush1.msra.mxu0 0.0
        %944 = vmatprep.subr.mxu0 0.0
        %945 = vmatpush1.msra.mxu0 0.0
        %946 = vmatprep.subr.mxu0 0.0
        %947 = vmatpush1.msra.mxu0 0.0
        %948 = vmatprep.subr.mxu0 0.0
        %949 = vmatpush1.msra.mxu0 0.0
        %950 = vmatprep.subr.mxu0 0.0
        %951 = vmatpush1.msra.mxu0 0.0
        %952 = vmatprep.subr.mxu0 0.0
        %953 = vmatpush1.msra.mxu0 0.0
        %954 = vmatprep.subr.mxu0 0.0
        %955 = vmatpush1.msra.mxu0 0.0
        %956 = vmatprep.subr.mxu0 0.0
        %957 = vmatpush1.msra.mxu0 0.0
        %958 = vmatprep.subr.mxu0 0.0
        %959 = vmatpush1.msra.mxu0 0.0
        %960 = vmatprep.subr.mxu0 0.0
        %961 = vmatpush1.msra.mxu0 0.0
        %962 = vmatprep.subr.mxu0 0.0
        %963 = vmatpush1.msra.mxu0 0.0
        %964 = vmatprep.subr.mxu0 0.0
        %965 = vmatpush1.msra.mxu0 0.0
        %966 = vmatprep.mubr.f32.mxu0 0.0
        %967 = vmatmul.mubr.f32.gmra.mrb[0].mxu0 %v884
        %v968 = vpop.f32.mrb[0].mxu0
        %v969 = vadd.f32 %v457, %v968
        %v970 = vpop.f32.mrb[0].mxu0
        %971 = vmatprep.mubr.f32.mxu0 0.0
        %972 = vmatmul.mubr.f32.gmra.mrb[0].mxu0 %v889
        %v973 = vpop.f32.mrb[0].mxu0
        %v974 = vadd.f32 %v458, %v973
        %v975 = vpop.f32.mrb[0].mxu0
        %976 = vmatprep.mubr.f32.mxu0 0.0
        %977 = vmatmul.mubr.f32.gmra.mrb[0].mxu0 %v894
        %v978 = vpop.f32.mrb[0].mxu0
        %v979 = vadd.f32 %v459, %v978
        %v980 = vpop.f32.mrb[0].mxu0
        %981 = vmatprep.mubr.f32.mxu0 0.0
        %982 = vmatmul.mubr.f32.gmra.mrb[0].mxu0 %v899
        %v983 = vpop.f32.mrb[0].mxu0
        %v984 = vadd.f32 %v460, %v983
        %v985 = vpop.f32.mrb[0].mxu0
        %986 = vdwg.mxu0
        %987 = vmatprep.subr.mxu0 0.0
        %988 = vmatpush1.msra.mxu0 %v461
        %989 = vmatprep.subr.mxu0 0.0
        %990 = vmatpush1.msra.mxu0 %v462
        %991 = vmatprep.subr.mxu0 0.0
        %992 = vmatpush1.msra.mxu0 %v463
        %993 = vmatprep.subr.mxu0 0.0
        %994 = vmatpush1.msra.mxu0 %v464
        %995 = vmatprep.subr.mxu0 0.0
        %996 = vmatpush1.msra.mxu0 %v465
        %997 = vmatprep.subr.mxu0 0.0
        %998 = vmatpush1.msra.mxu0 %v466
        %999 = vmatprep.subr.mxu0 0.0
        %1000 = vmatpush1.msra.mxu0 %v467
        %1001 = vmatprep.subr.mxu0 0.0
        %1002 = vmatpush1.msra.mxu0 %v468
        %1003 = vmatprep.subr.mxu0 0.0
        %1004 = vmatpush1.msra.mxu0 %v469
        %1005 = vmatprep.subr.mxu0 0.0
        %1006 = vmatpush1.msra.mxu0 %v470
        %1007 = vmatprep.subr.mxu0 0.0
        %1008 = vmatpush1.msra.mxu0 %v471
        %1009 = vmatprep.subr.mxu0 0.0
        %1010 = vmatpush1.msra.mxu0 %v472
        %1011 = vmatprep.subr.mxu0 0.0
        %1012 = vmatpush1.msra.mxu0 %v473
        %1013 = vmatprep.subr.mxu0 0.0
        %1014 = vmatpush1.msra.mxu0 %v474
        %1015 = vmatprep.subr.mxu0 0.0
        %1016 = vmatpush1.msra.mxu0 %v475
        %1017 = vmatprep.subr.mxu0 0.0
        %1018 = vmatpush1.msra.mxu0 %v476
        %1019 = vmatprep.subr.mxu0 0.0
        %1020 = vmatpush1.msra.mxu0 0.0
        %1021 = vmatprep.subr.mxu0 0.0
        %1022 = vmatpush1.msra.mxu0 0.0
        %1023 = vmatprep.subr.mxu0 0.0
        %1024 = vmatpush1.msra.mxu0 0.0
        %1025 = vmatprep.subr.mxu0 0.0
        %1026 = vmatpush1.msra.mxu0 0.0
        %1027 = vmatprep.subr.mxu0 0.0
        %1028 = vmatpush1.msra.mxu0 0.0
        %1029 = vmatprep.subr.mxu0 0.0
        %1030 = vmatpush1.msra.mxu0 0.0
        %1031 = vmatprep.subr.mxu0 0.0
        %1032 = vmatpush1.msra.mxu0 0.0
        %1033 = vmatprep.subr.mxu0 0.0
        %1034 = vmatpush1.msra.mxu0 0.0
        %1035 = vmatprep.subr.mxu0 0.0
        %1036 = vmatpush1.msra.mxu0 0.0
        %1037 = vmatprep.subr.mxu0 0.0
        %1038 = vmatpush1.msra.mxu0 0.0
        %1039 = vmatprep.subr.mxu0 0.0
        %1040 = vmatpush1.msra.mxu0 0.0
        %1041 = vmatprep.subr.mxu0 0.0
        %1042 = vmatpush1.msra.mxu0 0.0
        %1043 = vmatprep.subr.mxu0 0.0
        %1044 = vmatpush1.msra.mxu0 0.0
        %1045 = vmatprep.subr.mxu0 0.0
        %1046 = vmatpush1.msra.mxu0 0.0
        %1047 = vmatprep.subr.mxu0 0.0
        %1048 = vmatpush1.msra.mxu0 0.0
        %1049 = vmatprep.subr.mxu0 0.0
        %1050 = vmatpush1.msra.mxu0 0.0
        %1051 = vmatprep.mubr.f32.mxu0 0.0
        %1052 = vmatmul.mubr.f32.gmra.mrb[0].mxu0 %v969
        %v1053 = vpop.f32.mrb[0].mxu0
        %v1054 = vadd.f32 %v457, %v1053
        %v1055 = vpop.f32.mrb[0].mxu0
        %1056 = vmatprep.mubr.f32.mxu0 0.0
        %1057 = vmatmul.mubr.f32.gmra.mrb[0].mxu0 %v974
        %v1058 = vpop.f32.mrb[0].mxu0
        %v1059 = vadd.f32 %v458, %v1058
        %v1060 = vpop.f32.mrb[0].mxu0
        %1061 = vmatprep.mubr.f32.mxu0 0.0
        %1062 = vmatmul.mubr.f32.gmra.mrb[0].mxu0 %v979
        %v1063 = vpop.f32.mrb[0].mxu0
        %v1064 = vadd.f32 %v459, %v1063
        %v1065 = vpop.f32.mrb[0].mxu0
        %1066 = vmatprep.mubr.f32.mxu0 0.0
        %1067 = vmatmul.mubr.f32.gmra.mrb[0].mxu0 %v984
        %v1068 = vpop.f32.mrb[0].mxu0
        %v1069 = vadd.f32 %v460, %v1068
        %v1070 = vpop.f32.mrb[0].mxu0
        %1071 = vdwg.mxu0
        %1072 = vmatprep.subr.mxu0 0.0
        %1073 = vmatpush1.msra.mxu0 %v461
        %1074 = vmatprep.subr.mxu0 0.0
        %1075 = vmatpush1.msra.mxu0 %v462
        %1076 = vmatprep.subr.mxu0 0.0
        %1077 = vmatpush1.msra.mxu0 %v463
        %1078 = vmatprep.subr.mxu0 0.0
        %1079 = vmatpush1.msra.mxu0 %v464
        %1080 = vmatprep.subr.mxu0 0.0
        %1081 = vmatpush1.msra.mxu0 %v465
        %1082 = vmatprep.subr.mxu0 0.0
        %1083 = vmatpush1.msra.mxu0 %v466
        %1084 = vmatprep.subr.mxu0 0.0
        %1085 = vmatpush1.msra.mxu0 %v467
        %1086 = vmatprep.subr.mxu0 0.0
        %1087 = vmatpush1.msra.mxu0 %v468
        %1088 = vmatprep.subr.mxu0 0.0
        %1089 = vmatpush1.msra.mxu0 %v469
        %1090 = vmatprep.subr.mxu0 0.0
        %1091 = vmatpush1.msra.mxu0 %v470
        %1092 = vmatprep.subr.mxu0 0.0
        %1093 = vmatpush1.msra.mxu0 %v471
        %1094 = vmatprep.subr.mxu0 0.0
        %1095 = vmatpush1.msra.mxu0 %v472
        %1096 = vmatprep.subr.mxu0 0.0
        %1097 = vmatpush1.msra.mxu0 %v473
        %1098 = vmatprep.subr.mxu0 0.0
        %1099 = vmatpush1.msra.mxu0 %v474
        %1100 = vmatprep.subr.mxu0 0.0
        %1101 = vmatpush1.msra.mxu0 %v475
        %1102 = vmatprep.subr.mxu0 0.0
        %1103 = vmatpush1.msra.mxu0 %v476
        %1104 = vmatprep.subr.mxu0 0.0
        %1105 = vmatpush1.msra.mxu0 0.0
        %1106 = vmatprep.subr.mxu0 0.0
        %1107 = vmatpush1.msra.mxu0 0.0
        %1108 = vmatprep.subr.mxu0 0.0
        %1109 = vmatpush1.msra.mxu0 0.0
        %1110 = vmatprep.subr.mxu0 0.0
        %1111 = vmatpush1.msra.mxu0 0.0
        %1112 = vmatprep.subr.mxu0 0.0
        %1113 = vmatpush1.msra.mxu0 0.0
        %1114 = vmatprep.subr.mxu0 0.0
        %1115 = vmatpush1.msra.mxu0 0.0
        %1116 = vmatprep.subr.mxu0 0.0
        %1117 = vmatpush1.msra.mxu0 0.0
        %1118 = vmatprep.subr.mxu0 0.0
        %1119 = vmatpush1.msra.mxu0 0.0
        %1120 = vmatprep.subr.mxu0 0.0
        %1121 = vmatpush1.msra.mxu0 0.0
        %1122 = vmatprep.subr.mxu0 0.0
        %1123 = vmatpush1.msra.mxu0 0.0
        %1124 = vmatprep.subr.mxu0 0.0
        %1125 = vmatpush1.msra.mxu0 0.0
        %1126 = vmatprep.subr.mxu0 0.0
        %1127 = vmatpush1.msra.mxu0 0.0
        %1128 = vmatprep.subr.mxu0 0.0
        %1129 = vmatpush1.msra.mxu0 0.0
        %1130 = vmatprep.subr.mxu0 0.0
        %1131 = vmatpush1.msra.mxu0 0.0
        %1132 = vmatprep.subr.mxu0 0.0
        %1133 = vmatpush1.msra.mxu0 0.0
        %1134 = vmatprep.subr.mxu0 0.0
        %1135 = vmatpush1.msra.mxu0 0.0
        %1136 = vmatprep.mubr.f32.mxu0 0.0
        %1137 = vmatmul.mubr.f32.gmra.mrb[0].mxu0 %v1054
        %v1138 = vpop.f32.mrb[0].mxu0
        %v1139 = vadd.f32 %v457, %v1138
        %v1140 = vpop.f32.mrb[0].mxu0
        %1141 = vmatprep.mubr.f32.mxu0 0.0
        %1142 = vmatmul.mubr.f32.gmra.mrb[0].mxu0 %v1059
        %v1143 = vpop.f32.mrb[0].mxu0
        %v1144 = vadd.f32 %v458, %v1143
        %v1145 = vpop.f32.mrb[0].mxu0
        %1146 = vmatprep.mubr.f32.mxu0 0.0
        %1147 = vmatmul.mubr.f32.gmra.mrb[0].mxu0 %v1064
        %v1148 = vpop.f32.mrb[0].mxu0
        %v1149 = vadd.f32 %v459, %v1148
        %v1150 = vpop.f32.mrb[0].mxu0
        %1151 = vmatprep.mubr.f32.mxu0 0.0
        %1152 = vmatmul.mubr.f32.gmra.mrb[0].mxu0 %v1069
        %v1153 = vpop.f32.mrb[0].mxu0
        %v1154 = vadd.f32 %v460, %v1153
        %v1155 = vpop.f32.mrb[0].mxu0
        %1156 = vdwg.mxu0
        %1157 = vmatprep.subr.mxu0 0.0
        %1158 = vmatpush1.msra.mxu0 %v461
        %1159 = vmatprep.subr.mxu0 0.0
        %1160 = vmatpush1.msra.mxu0 %v462
        %1161 = vmatprep.subr.mxu0 0.0
        %1162 = vmatpush1.msra.mxu0 %v463
        %1163 = vmatprep.subr.mxu0 0.0
        %1164 = vmatpush1.msra.mxu0 %v464
        %1165 = vmatprep.subr.mxu0 0.0
        %1166 = vmatpush1.msra.mxu0 %v465
        %1167 = vmatprep.subr.mxu0 0.0
        %1168 = vmatpush1.msra.mxu0 %v466
        %1169 = vmatprep.subr.mxu0 0.0
        %1170 = vmatpush1.msra.mxu0 %v467
        %1171 = vmatprep.subr.mxu0 0.0
        %1172 = vmatpush1.msra.mxu0 %v468
        %1173 = vmatprep.subr.mxu0 0.0
        %1174 = vmatpush1.msra.mxu0 %v469
        %1175 = vmatprep.subr.mxu0 0.0
        %1176 = vmatpush1.msra.mxu0 %v470
        %1177 = vmatprep.subr.mxu0 0.0
        %1178 = vmatpush1.msra.mxu0 %v471
        %1179 = vmatprep.subr.mxu0 0.0
        %1180 = vmatpush1.msra.mxu0 %v472
        %1181 = vmatprep.subr.mxu0 0.0
        %1182 = vmatpush1.msra.mxu0 %v473
        %1183 = vmatprep.subr.mxu0 0.0
        %1184 = vmatpush1.msra.mxu0 %v474
        %1185 = vmatprep.subr.mxu0 0.0
        %1186 = vmatpush1.msra.mxu0 %v475
        %1187 = vmatprep.subr.mxu0 0.0
        %1188 = vmatpush1.msra.mxu0 %v476
        %1189 = vmatprep.subr.mxu0 0.0
        %1190 = vmatpush1.msra.mxu0 0.0
        %1191 = vmatprep.subr.mxu0 0.0
        %1192 = vmatpush1.msra.mxu0 0.0
        %1193 = vmatprep.subr.mxu0 0.0
        %1194 = vmatpush1.msra.mxu0 0.0
        %1195 = vmatprep.subr.mxu0 0.0
        %1196 = vmatpush1.msra.mxu0 0.0
        %1197 = vmatprep.subr.mxu0 0.0
        %1198 = vmatpush1.msra.mxu0 0.0
        %1199 = vmatprep.subr.mxu0 0.0
        %1200 = vmatpush1.msra.mxu0 0.0
        %1201 = vmatprep.subr.mxu0 0.0
        %1202 = vmatpush1.msra.mxu0 0.0
        %1203 = vmatprep.subr.mxu0 0.0
        %1204 = vmatpush1.msra.mxu0 0.0
        %1205 = vmatprep.subr.mxu0 0.0
        %1206 = vmatpush1.msra.mxu0 0.0
        %1207 = vmatprep.subr.mxu0 0.0
        %1208 = vmatpush1.msra.mxu0 0.0
        %1209 = vmatprep.subr.mxu0 0.0
        %1210 = vmatpush1.msra.mxu0 0.0
        %1211 = vmatprep.subr.mxu0 0.0
        %1212 = vmatpush1.msra.mxu0 0.0
        %1213 = vmatprep.subr.mxu0 0.0
        %1214 = vmatpush1.msra.mxu0 0.0
        %1215 = vmatprep.subr.mxu0 0.0
        %1216 = vmatpush1.msra.mxu0 0.0
        %1217 = vmatprep.subr.mxu0 0.0
        %1218 = vmatpush1.msra.mxu0 0.0
        %1219 = vmatprep.subr.mxu0 0.0
        %1220 = vmatpush1.msra.mxu0 0.0
        %1221 = vmatprep.mubr.f32.mxu0 0.0
        %1222 = vmatmul.mubr.f32.gmra.mrb[0].mxu0 %v1139
        %v1223 = vpop.f32.mrb[0].mxu0
        %v1224 = vadd.f32 %v457, %v1223
        %v1225 = vpop.f32.mrb[0].mxu0
        %1226 = vmatprep.mubr.f32.mxu0 0.0
        %1227 = vmatmul.mubr.f32.gmra.mrb[0].mxu0 %v1144
        %v1228 = vpop.f32.mrb[0].mxu0
        %v1229 = vadd.f32 %v458, %v1228
        %v1230 = vpop.f32.mrb[0].mxu0
        %1231 = vmatprep.mubr.f32.mxu0 0.0
        %1232 = vmatmul.mubr.f32.gmra.mrb[0].mxu0 %v1149
        %v1233 = vpop.f32.mrb[0].mxu0
        %v1234 = vadd.f32 %v459, %v1233
        %v1235 = vpop.f32.mrb[0].mxu0
        %1236 = vmatprep.mubr.f32.mxu0 0.0
        %1237 = vmatmul.mubr.f32.gmra.mrb[0].mxu0 %v1154
        %v1238 = vpop.f32.mrb[0].mxu0
        %v1239 = vadd.f32 %v460, %v1238
        %v1240 = vpop.f32.mrb[0].mxu0
        %1241 = vdwg.mxu0
        %1242 = vmatprep.subr.mxu0 0.0
        %1243 = vmatpush1.msra.mxu0 %v461
        %1244 = vmatprep.subr.mxu0 0.0
        %1245 = vmatpush1.msra.mxu0 %v462
        %1246 = vmatprep.subr.mxu0 0.0
        %1247 = vmatpush1.msra.mxu0 %v463
        %1248 = vmatprep.subr.mxu0 0.0
        %1249 = vmatpush1.msra.mxu0 %v464
        %1250 = vmatprep.subr.mxu0 0.0
        %1251 = vmatpush1.msra.mxu0 %v465
        %1252 = vmatprep.subr.mxu0 0.0
        %1253 = vmatpush1.msra.mxu0 %v466
        %1254 = vmatprep.subr.mxu0 0.0
        %1255 = vmatpush1.msra.mxu0 %v467
        %1256 = vmatprep.subr.mxu0 0.0
        %1257 = vmatpush1.msra.mxu0 %v468
        %1258 = vmatprep.subr.mxu0 0.0
        %1259 = vmatpush1.msra.mxu0 %v469
        %1260 = vmatprep.subr.mxu0 0.0
        %1261 = vmatpush1.msra.mxu0 %v470
        %1262 = vmatprep.subr.mxu0 0.0
        %1263 = vmatpush1.msra.mxu0 %v471
        %1264 = vmatprep.subr.mxu0 0.0
        %1265 = vmatpush1.msra.mxu0 %v472
        %1266 = vmatprep.subr.mxu0 0.0
        %1267 = vmatpush1.msra.mxu0 %v473
        %1268 = vmatprep.subr.mxu0 0.0
        %1269 = vmatpush1.msra.mxu0 %v474
        %1270 = vmatprep.subr.mxu0 0.0
        %1271 = vmatpush1.msra.mxu0 %v475
        %1272 = vmatprep.subr.mxu0 0.0
        %1273 = vmatpush1.msra.mxu0 %v476
        %1274 = vmatprep.subr.mxu0 0.0
        %1275 = vmatpush1.msra.mxu0 0.0
        %1276 = vmatprep.subr.mxu0 0.0
        %1277 = vmatpush1.msra.mxu0 0.0
        %1278 = vmatprep.subr.mxu0 0.0
        %1279 = vmatpush1.msra.mxu0 0.0
        %1280 = vmatprep.subr.mxu0 0.0
        %1281 = vmatpush1.msra.mxu0 0.0
        %1282 = vmatprep.subr.mxu0 0.0
        %1283 = vmatpush1.msra.mxu0 0.0
        %1284 = vmatprep.subr.mxu0 0.0
        %1285 = vmatpush1.msra.mxu0 0.0
        %1286 = vmatprep.subr.mxu0 0.0
        %1287 = vmatpush1.msra.mxu0 0.0
        %1288 = vmatprep.subr.mxu0 0.0
        %1289 = vmatpush1.msra.mxu0 0.0
        %1290 = vmatprep.subr.mxu0 0.0
        %1291 = vmatpush1.msra.mxu0 0.0
        %1292 = vmatprep.subr.mxu0 0.0
        %1293 = vmatpush1.msra.mxu0 0.0
        %1294 = vmatprep.subr.mxu0 0.0
        %1295 = vmatpush1.msra.mxu0 0.0
        %1296 = vmatprep.subr.mxu0 0.0
        %1297 = vmatpush1.msra.mxu0 0.0
        %1298 = vmatprep.subr.mxu0 0.0
        %1299 = vmatpush1.msra.mxu0 0.0
        %1300 = vmatprep.subr.mxu0 0.0
        %1301 = vmatpush1.msra.mxu0 0.0
        %1302 = vmatprep.subr.mxu0 0.0
        %1303 = vmatpush1.msra.mxu0 0.0
        %1304 = vmatprep.subr.mxu0 0.0
        %1305 = vmatpush1.msra.mxu0 0.0
        %1306 = vmatprep.mubr.f32.mxu0 0.0
        %1307 = vmatmul.mubr.f32.gmra.mrb[0].mxu0 %v1224
        %v1308 = vpop.f32.mrb[0].mxu0
        %v1309 = vadd.f32 %v457, %v1308
        %v1310 = vpop.f32.mrb[0].mxu0
        %1311 = vmatprep.mubr.f32.mxu0 0.0
        %1312 = vmatmul.mubr.f32.gmra.mrb[0].mxu0 %v1229
        %v1313 = vpop.f32.mrb[0].mxu0
        %v1314 = vadd.f32 %v458, %v1313
        %v1315 = vpop.f32.mrb[0].mxu0
        %1316 = vmatprep.mubr.f32.mxu0 0.0
        %1317 = vmatmul.mubr.f32.gmra.mrb[0].mxu0 %v1234
        %v1318 = vpop.f32.mrb[0].mxu0
        %v1319 = vadd.f32 %v459, %v1318
        %v1320 = vpop.f32.mrb[0].mxu0
        %1321 = vmatprep.mubr.f32.mxu0 0.0
        %1322 = vmatmul.mubr.f32.gmra.mrb[0].mxu0 %v1239
        %v1323 = vpop.f32.mrb[0].mxu0
        %v1324 = vadd.f32 %v460, %v1323
        %v1325 = vpop.f32.mrb[0].mxu0
        %1326 = vdwg.mxu0
        %1327 = vst [vmem:[%s256] sm:$0xff] %v1309
        %1328 = vst [vmem:[%s256 + $0x8] sm:$0xff] %v1314
        %1329 = vst [vmem:[%s256 + $0x10] sm:$0xff] %v1319
        %1330 = vst [vmem:[%s256 + $0x18] sm:$0xff] %v1324
        %s1331 = sand.u32 %s133, 1
        %s1332 = scalar_lea.sflag [#allocation5], %s1331
        %s1333 = sand.u32 %s133, 1
        %s1334 = smul.addr %s1333, 32
        %s1335 = scalar_lea.vmem [#allocation6], %s1334
        // Predicated region
        $region41: #{tpu_custom_call.1} parent=35 // pred_check
          %p1336 = pneg %p143
        $region42: #{tpu_custom_call.1} parent=35 // pred_check_branch
          %1338 = sbr.rel (%p1336) target = $region44
        $region43: #{tpu_custom_call.1} parent=35 // pred_region
          %s1340 = ssub.s32 512, 512
          %1341 = vsyncadd %s1332, %s1340
          %s1342 = smul.addr %s21, 4
          %s1343 = smul.addr %s1342, 128
          %s1344 = scalar_lea.hbm %s4, %s1343
          %s1345 = sshll.u32 %s1335, 4
          %s1346 = int_to_ptr.vmem [resolvable:$true] %s1345
          %1351 = dma.vmem_to_hbm [thread:$0]  %s1346, 512, %s1344, %s1332, 128, 128, 8
        $region44: #{tpu_custom_call.1} parent=35 // pred_fallthru
          _
      $region36: #{tpu_custom_call.1} parent=5 // pred_fallthru
        _
      %p1352 = scmp.le.s32.totalorder 2, %s16
      // Predicated region
      $region45: #{tpu_custom_call.1} parent=5 // pred_check
        %p1353 = pneg %p1352
      $region46: #{tpu_custom_call.1} parent=5 // pred_check_branch
        %1355 = sbr.rel (%p1353) target = $region48
      $region47: #{tpu_custom_call.1} parent=5 // pred_region
        %s1356 = ssub.s32 %s16, 2
        // Predicated region
        $region49: #{tpu_custom_call.1} parent=47 // pred_check
          %p1357 = pneg %p149
        $region50: #{tpu_custom_call.1} parent=47 // pred_check_branch
          %1359 = sbr.rel (%p1357) target = $region52
        $region51: #{tpu_custom_call.1} parent=47 // pred_region
          %s1360 = sand.u32 %s134, 1
          %s1361 = scalar_lea.sflag [#allocation5], %s1360
          %s1362 = sand.u32 %s134, 1
          %s1363 = smul.addr %s1362, 32
          %s1364 = scalar_lea.vmem [#allocation6], %s1363
          %1365 = dma.done %s1361, 512
        $region52: #{tpu_custom_call.1} parent=47 // pred_fallthru
          _
      $region48: #{tpu_custom_call.1} parent=5 // pred_fallthru
        _
    $region6: #{tpu_custom_call.1} parent=1 // loop_footer
      %s20 = sadd.s32 1, %s16
    $region7: #{tpu_custom_call.1} parent=1 // loop_footer_branch
      %15 = sbr.rel target = $region3
    $region8: #{tpu_custom_call.1} parent=1 // loop_exit
      _
    %1366 = vsyncpa [#allocation4], 1
    %s1367 = scalar_lea.sflag [#allocation4], 1
    %1368 = vsyncpa %s1367, 1
    %1369 = vsyncpa [#allocation5], 1
    %s1370 = scalar_lea.sflag [#allocation5], 1
    %1371 = vsyncpa %s1370, 1

</llo_original>
